<compile_context>
chip_gen: v5e
topology: v5e:2x2
jax: 0.10.0
libtpu: 0.0.40
codegen_flags: <defaults>
</compile_context>

<pallas_src>
import math

import jax
import jax.numpy as jnp
import numpy as np
from jax import lax
from jax.experimental import pallas as pl
from jax.experimental.pallas import tpu as pltpu

# Small, lane-friendly sizes.
B, S, H, M, F, VOCAB = 2, 8, 128, 64, 256, 64


def _choose_bblk(batch, seq, target_rows=256):
    """Pick a batch block so each grid step packs ~target_rows MXU rows while
    keeping >=2 grid steps (both v7x TensorCores fed)."""
    bblk = max(1, min(batch, target_rows // max(seq, 1)))
    while bblk > 1 and batch // bblk < 2:
        bblk -= 1
    while batch % bblk:
        bblk -= 1
    return bblk


BBLK = _choose_bblk(B, S)
R = BBLK * S                      # packed rows per grid step


def _sym_attn_kernel(ids_ref,                                   # SMEM (B, S) int32 (prefetched)
                     emb_tbl_ref, mem_ref, maskb_ref,
                     wp_ref, bp_ref, wge_ref, wgm_ref, bg_ref,
                     wqkv_ref, bqkv_ref, wo_ref, bo_ref, ln_ref,
                     w1_ref, b1_ref, w2_ref, b2_ref,
                     out_ref, emb_scr):
    pid = pl.program_id(0)
    bf16, f32 = jnp.bfloat16, jnp.float32

    # ---- embedding gather: token ids from SMEM, table resident in VMEM ----
    for r in range(R):                                          # static unroll (R is small)
        tok = ids_ref[pid * BBLK + r // S, r % S]
        emb_scr[pl.ds(r, 1), :] = emb_tbl_ref[pl.ds(tok, 1), :]
    emb = emb_scr[...]                                          # (R, H) f32

    # ---- memory_projector (tiny M=64 reduction; f32 since it feeds gate/fusion) ----
    mem = mem_ref[...].reshape(BBLK, M)
    proj = jnp.dot(mem, wp_ref[...], preferred_element_type=f32) + bp_ref[...]     # (BBLK, H)
    proj_rows = jnp.broadcast_to(proj[:, None, :], (BBLK, S, H)).reshape(R, H)

    # ---- memory_gate: VPU multiply + lane reduce (not N=1 MXU matvecs) ----
    g_emb = jnp.sum(emb * wge_ref[...], axis=-1, keepdims=True)                    # (R, 1)
    g_mem = jnp.sum(proj * wgm_ref[...], axis=-1, keepdims=True)                   # (BBLK, 1)
    g_mem_rows = jnp.broadcast_to(g_mem[:, None, :], (BBLK, S, 1)).reshape(R, 1)
    gate = jax.nn.sigmoid(g_emb + g_mem_rows + bg_ref[...])                        # (R, 1) f32

    fused = emb * (1.0 - gate) + proj_rows * gate                                  # (R, H) f32

    # ---- fused QKV: one (R,H)@(H,3H) bf16 matmul, f32 accumulation ----
    qkv = jnp.dot(fused.astype(bf16), wqkv_ref[...],
                  preferred_element_type=f32) + bqkv_ref[...]                      # (R, 3H)
    q = qkv[:, 0 * H:1 * H].reshape(BBLK, S, H)      # 1/sqrt(H) already folded into Wq/bq
    k = qkv[:, 1 * H:2 * H].reshape(BBLK, S, H)
    v = qkv[:, 2 * H:3 * H].reshape(BBLK, S, H)

    # ---- attention per sequence (batched dot_general; no explicit transpose) ----
    scores = lax.dot_general(q.astype(bf16), k.astype(bf16),
                             (((2,), (2,)), ((0,), (0,))),
                             preferred_element_type=f32)                           # (BBLK, S, S)
    scores = scores + maskb_ref[...]                  # additive bias (BBLK, 1, S), broadcast over queries
    smax = jnp.max(scores, axis=-1, keepdims=True)
    p = jnp.exp(scores - smax)
    p = p * pl.reciprocal(jnp.sum(p, axis=-1, keepdims=True), approx=True)
    attn = lax.dot_general(p.astype(bf16), v.astype(bf16),
                           (((2,), (1,)), ((0,), (0,))),
                           preferred_element_type=f32)                             # (BBLK, S, H)
    o = jnp.dot(attn.reshape(R, H).astype(bf16), wo_ref[...],
                preferred_element_type=f32) + bo_ref[...]                          # (R, H)

    def layer_norm(x, g, b):
        mu = jnp.mean(x, axis=-1, keepdims=True)
        var = jnp.mean((x - mu) ** 2, axis=-1, keepdims=True)
        return (x - mu) * lax.rsqrt(var + 1e-5) * g + b

    h = layer_norm(fused + o, ln_ref[0], ln_ref[1])                                # (R, H) f32
    ff = jnp.dot(h.astype(bf16), w1_ref[...],
                 preferred_element_type=f32) + b1_ref[...]                         # (R, F)
    ff = jax.nn.gelu(ff)                                                           # f32 EUP path
    ff = jnp.dot(ff.astype(bf16), w2_ref[...],
                 preferred_element_type=f32) + b2_ref[...]                         # (R, H)
    out = layer_norm(h + ff, ln_ref[2], ln_ref[3])
    out_ref[...] = out.reshape(BBLK, S, H).astype(out_ref.dtype)   # lane-dense (..., 128) store


def symbolic_attention_forward(input_ids, attention_mask, symbolic_memory, kp):
    nblk = B // BBLK
    # Additive attention bias; lane-narrow at S=8 (fine here; pad S toward 128 when scaled).
    mask_bias = ((1.0 - attention_mask.astype(jnp.float32)) * -1e9).reshape(B, 1, S)
    mem = symbolic_memory.reshape(B, 1, M).astype(jnp.float32)

    def resident(shape):          # weights: constant index_map -> resident in VMEM
        return pl.BlockSpec(shape, lambda b, ids, _n=len(shape): (0,) * _n)

    in_specs = [
        resident((VOCAB, H)),                                     # embedding table
        pl.BlockSpec((BBLK, 1, M), lambda b, ids: (b, 0, 0)),     # symbolic memory
        pl.BlockSpec((BBLK, 1, S), lambda b, ids: (b, 0, 0)),     # additive mask bias
        resident((M, H)), resident((1, H)),                       # memory_projector W, b
        resident((1, H)), resident((1, H)), resident((1, 1)),     # memory_gate rows + bias
        resident((H, 3 * H)), resident((1, 3 * H)),               # fused Wqkv, bqkv
        resident((H, H)), resident((1, H)),                       # Wo, bo
        resident((4, 1, H)),                                      # ln1_g, ln1_b, ln2_g, ln2_b
        resident((H, F)), resident((1, F)),                       # FFN up
        resident((F, H)), resident((1, H)),                       # FFN down
    ]
    # TODO(synk): at scaled-up H/F, single-buffer the resident weight specs
    # (pipeline_mode=pl.Buffered(1)) and re-derive tiling against v7x's 64 MiB VMEM.

    return pl.pallas_call(
        _sym_attn_kernel,
        out_shape=jax.ShapeDtypeStruct((B, S, H), jnp.float32),
        grid_spec=pltpu.PrefetchScalarGridSpec(
            num_scalar_prefetch=1,                  # input_ids -> SMEM, gathered in-kernel
            grid=(nblk,),
            in_specs=in_specs,
            out_specs=pl.BlockSpec((BBLK, S, H), lambda b, ids: (b, 0, 0)),
            scratch_shapes=[pltpu.VMEM((R, H), jnp.float32)],
        ),
        compiler_params=pltpu.CompilerParams(dimension_semantics=("parallel",)),
    )(input_ids.astype(jnp.int32),
      kp["emb_table"], mem, mask_bias,
      kp["wp"], kp["bp"], kp["wge"], kp["wgm"], kp["bg"],
      kp["wqkv"], kp["bqkv"], kp["wo"], kp["bo"], kp["ln"],
      kp["w1"], kp["b1"], kp["w2"], kp["b2"])


def init_params(key):
    """PyTorch-layout parameters (f32, separate Wq/Wk/Wv/Wo) used by the reference."""
    ks = jax.random.split(key, 16)
    s = 0.02
    n = lambda i, shape: jax.random.normal(ks[i], shape, jnp.float32) * s
    return {
        "emb_table": n(0, (VOCAB, H)),
        "wp": n(1, (M, H)), "bp": n(2, (H,)),
        "wge": n(3, (H, 1)), "wgm": n(4, (H, 1)), "bg": n(5, (1,)),
        "wq": n(6, (H, H)), "wk": n(7, (H, H)), "wv": n(8, (H, H)), "wo": n(9, (H, H)),
        "bq": n(10, (H,)), "bk": n(11, (H,)), "bv": n(12, (H,)), "bo": n(13, (H,)),
        "ln1_g": jnp.ones((H,), jnp.float32), "ln1_b": jnp.zeros((H,), jnp.float32),
        "ln2_g": jnp.ones((H,), jnp.float32), "ln2_b": jnp.zeros((H,), jnp.float32),
        "w1": n(14, (H, F)), "b1": jnp.zeros((F,), jnp.float32),
        "w2": n(15, (F, H)), "b2": jnp.zeros((H,), jnp.float32),
    }


def prepare_kernel_params(p):
    """Kernel layout: fused QKV with 1/sqrt(H) folded into Wq/bq, bf16 heavy weights,
    gate weights as (1, H) rows for the VPU reduce path."""
    bf16 = jnp.bfloat16
    inv = 1.0 / math.sqrt(H)
    wqkv = jnp.concatenate([p["wq"] * inv, p["wk"], p["wv"]], axis=1).astype(bf16)   # (H, 3H)
    bqkv = jnp.concatenate([p["bq"] * inv, p["bk"], p["bv"]]).reshape(1, 3 * H)      # f32
    return {
        "emb_table": p["emb_table"],                      # f32, gathered in-kernel
        "wp": p["wp"], "bp": p["bp"].reshape(1, H),       # f32 (tiny; feeds gate/fusion)
        "wge": p["wge"].reshape(1, H), "wgm": p["wgm"].reshape(1, H),
        "bg": p["bg"].reshape(1, 1),
        "wqkv": wqkv, "bqkv": bqkv,
        "wo": p["wo"].astype(bf16), "bo": p["bo"].reshape(1, H),
        "ln": jnp.stack([p["ln1_g"], p["ln1_b"], p["ln2_g"], p["ln2_b"]]).reshape(4, 1, H),
        "w1": p["w1"].astype(bf16), "b1": p["b1"].reshape(1, F),
        "w2": p["w2"].astype(bf16), "b2": p["b2"].reshape(1, H),
    }


def reference_forward(input_ids, attention_mask, symbolic_memory, p):
    """Pure-JAX (f32) reference mirroring the PyTorch forward."""
    emb = p["emb_table"][input_ids]                                  # (B, S, H)
    proj = symbolic_memory @ p["wp"] + p["bp"]                       # (B, H)
    exp_mem = jnp.repeat(proj[:, None, :], S, axis=1)                # (B, S, H)
    gate = jax.nn.sigmoid(emb @ p["wge"] + exp_mem @ p["wgm"] + p["bg"])
    fused = emb * (1.0 - gate) + exp_mem * gate

    def ln(x, g, b):
        mu = x.mean(-1, keepdims=True)
        var = ((x - mu) ** 2).mean(-1, keepdims=True)
        return (x - mu) * jax.lax.rsqrt(var + 1e-5) * g + b

    q = fused @ p["wq"] + p["bq"]
    k = fused @ p["wk"] + p["bk"]
    v = fused @ p["wv"] + p["bv"]
    scores = jnp.einsum("bqd,bkd->bqk", q, k) / math.sqrt(H)
    scores = scores + (1.0 - attention_mask[:, None, :].astype(jnp.float32)) * -1e9
    probs = jax.nn.softmax(scores, axis=-1)
    o = jnp.einsum("bqk,bkd->bqd", probs, v) @ p["wo"] + p["bo"]
    h = ln(fused + o, p["ln1_g"], p["ln1_b"])
    ff = jax.nn.gelu(h @ p["w1"] + p["b1"]) @ p["w2"] + p["b2"]
    return ln(h + ff, p["ln2_g"], p["ln2_b"])


if __name__ == "__main__":
    key = jax.random.PRNGKey(0)
    kparam_key, kid, kmem = jax.random.split(key, 3)
    params = init_params(kparam_key)
    kparams = prepare_kernel_params(params)

    input_ids = jax.random.randint(kid, (B, S), 0, VOCAB)
    attention_mask = jnp.ones((B, S), jnp.int32).at[1, 6:].set(0)    # pad tail of 2nd seq
    symbolic_memory = jax.random.normal(kmem, (B, M), jnp.float32)

    out = symbolic_attention_forward(input_ids, attention_mask, symbolic_memory, kparams)
    out = jax.block_until_ready(out)

    ref = reference_forward(input_ids, attention_mask, symbolic_memory, params)
    assert out.shape == (B, S, H)
    # bf16 matmul operands (f32 accumulation) -> tolerance loosened vs. pure-f32 run.
    np.testing.assert_allclose(np.asarray(out), np.asarray(ref), rtol=1e-2, atol=1e-2)
    print("KERNEL_OK")
</pallas_src>

<mosaic_0001>
module attributes {stable_mosaic.version = 11 : i64} {
  func.func @_sym_attn_kernel(%arg0: i32, %arg1: memref<2x8xi32, #tpu.memory_space<smem>>, %arg2: memref<64x128xf32, #tpu.memory_space<vmem>>, %arg3: memref<1x1x64xf32, #tpu.memory_space<vmem>>, %arg4: memref<1x1x8xf32, #tpu.memory_space<vmem>>, %arg5: memref<64x128xf32, #tpu.memory_space<vmem>>, %arg6: memref<1x128xf32, #tpu.memory_space<vmem>>, %arg7: memref<1x128xf32, #tpu.memory_space<vmem>>, %arg8: memref<1x128xf32, #tpu.memory_space<vmem>>, %arg9: memref<1x1xf32, #tpu.memory_space<vmem>>, %arg10: memref<128x384xbf16, #tpu.memory_space<vmem>>, %arg11: memref<1x384xf32, #tpu.memory_space<vmem>>, %arg12: memref<128x128xbf16, #tpu.memory_space<vmem>>, %arg13: memref<1x128xf32, #tpu.memory_space<vmem>>, %arg14: memref<4x1x128xf32, #tpu.memory_space<vmem>>, %arg15: memref<128x256xbf16, #tpu.memory_space<vmem>>, %arg16: memref<1x256xf32, #tpu.memory_space<vmem>>, %arg17: memref<256x128xbf16, #tpu.memory_space<vmem>>, %arg18: memref<1x128xf32, #tpu.memory_space<vmem>>, %arg19: memref<1x8x128xf32, #tpu.memory_space<vmem>>, %arg20: memref<8x128xf32, #tpu.memory_space<vmem>>) attributes {dimension_semantics = [#tpu.dimension_semantics<parallel>], iteration_bounds = array<i64: 2>, scalar_prefetch = 1 : i64, scratch_operands = 1 : i64, tpu.core_type = #tpu.core_type<tc>, window_params = [{pipeline_mode = #tpu.pipeline_mode<synchronous>, transform_indices = @transform_0, window_bounds = array<i64: 64, 128>}, {transform_indices = @transform_1, window_bounds = array<i64: 1, 1, 64>}, {transform_indices = @transform_2, window_bounds = array<i64: 1, 1, 8>}, {pipeline_mode = #tpu.pipeline_mode<synchronous>, transform_indices = @transform_3, window_bounds = array<i64: 64, 128>}, {pipeline_mode = #tpu.pipeline_mode<synchronous>, transform_indices = @transform_4, window_bounds = array<i64: 1, 128>}, {pipeline_mode = #tpu.pipeline_mode<synchronous>, transform_indices = @transform_5, window_bounds = array<i64: 1, 128>}, {pipeline_mode = #tpu.pipeline_mode<synchronous>, transform_indices = @transform_6, window_bounds = array<i64: 1, 128>}, {pipeline_mode = #tpu.pipeline_mode<synchronous>, transform_indices = @transform_7, window_bounds = array<i64: 1, 1>}, {pipeline_mode = #tpu.pipeline_mode<synchronous>, transform_indices = @transform_8, window_bounds = array<i64: 128, 384>}, {pipeline_mode = #tpu.pipeline_mode<synchronous>, transform_indices = @transform_9, window_bounds = array<i64: 1, 384>}, {pipeline_mode = #tpu.pipeline_mode<synchronous>, transform_indices = @transform_10, window_bounds = array<i64: 128, 128>}, {pipeline_mode = #tpu.pipeline_mode<synchronous>, transform_indices = @transform_11, window_bounds = array<i64: 1, 128>}, {pipeline_mode = #tpu.pipeline_mode<synchronous>, transform_indices = @transform_12, window_bounds = array<i64: 4, 1, 128>}, {pipeline_mode = #tpu.pipeline_mode<synchronous>, transform_indices = @transform_13, window_bounds = array<i64: 128, 256>}, {pipeline_mode = #tpu.pipeline_mode<synchronous>, transform_indices = @transform_14, window_bounds = array<i64: 1, 256>}, {pipeline_mode = #tpu.pipeline_mode<synchronous>, transform_indices = @transform_15, window_bounds = array<i64: 256, 128>}, {pipeline_mode = #tpu.pipeline_mode<synchronous>, transform_indices = @transform_16, window_bounds = array<i64: 1, 128>}, {transform_indices = @transform_17, window_bounds = array<i64: 1, 8, 128>}]} {
    %c1_i32 = arith.constant 1 : i32
    %0 = arith.muli %arg0, %c1_i32 : i32
    %c0_i32 = arith.constant 0 : i32
    %1 = arith.addi %0, %c0_i32 : i32
    %2 = arith.index_cast %1 : i32 to index
    %c0 = arith.constant 0 : index
    %3 = memref.load %arg1[%2, %c0] : memref<2x8xi32, #tpu.memory_space<smem>>
    %4 = arith.index_cast %3 : i32 to index
    %c0_0 = arith.constant 0 : index
    %5 = vector.load %arg2[%4, %c0_0] : memref<64x128xf32, #tpu.memory_space<vmem>>, vector<1x128xf32>
    %c0_1 = arith.constant 0 : index
    %c0_2 = arith.constant 0 : index
    %6 = vector.load %arg20[%c0_1, %c0_2] : memref<8x128xf32, #tpu.memory_space<vmem>>, vector<1x128xf32>
    tpu.vector_store %arg20[%c0_1, %c0_2], %5 {strides = array<i32>} : memref<8x128xf32, #tpu.memory_space<vmem>>, vector<1x128xf32>,
    %c1_i32_3 = arith.constant 1 : i32
    %7 = arith.muli %arg0, %c1_i32_3 : i32
    %c0_i32_4 = arith.constant 0 : i32
    %8 = arith.addi %7, %c0_i32_4 : i32
    %9 = arith.index_cast %8 : i32 to index
    %c1 = arith.constant 1 : index
    %10 = memref.load %arg1[%9, %c1] : memref<2x8xi32, #tpu.memory_space<smem>>
    %11 = arith.index_cast %10 : i32 to index
    %c0_5 = arith.constant 0 : index
    %12 = vector.load %arg2[%11, %c0_5] : memref<64x128xf32, #tpu.memory_space<vmem>>, vector<1x128xf32>
    %c1_6 = arith.constant 1 : index
    %c0_7 = arith.constant 0 : index
    %13 = vector.load %arg20[%c1_6, %c0_7] : memref<8x128xf32, #tpu.memory_space<vmem>>, vector<1x128xf32>
    tpu.vector_store %arg20[%c1_6, %c0_7], %12 {strides = array<i32>} : memref<8x128xf32, #tpu.memory_space<vmem>>, vector<1x128xf32>,
    %c1_i32_8 = arith.constant 1 : i32
    %14 = arith.muli %arg0, %c1_i32_8 : i32
    %c0_i32_9 = arith.constant 0 : i32
    %15 = arith.addi %14, %c0_i32_9 : i32
    %16 = arith.index_cast %15 : i32 to index
    %c2 = arith.constant 2 : index
    %17 = memref.load %arg1[%16, %c2] : memref<2x8xi32, #tpu.memory_space<smem>>
    %18 = arith.index_cast %17 : i32 to index
    %c0_10 = arith.constant 0 : index
    %19 = vector.load %arg2[%18, %c0_10] : memref<64x128xf32, #tpu.memory_space<vmem>>, vector<1x128xf32>
    %c2_11 = arith.constant 2 : index
    %c0_12 = arith.constant 0 : index
    %20 = vector.load %arg20[%c2_11, %c0_12] : memref<8x128xf32, #tpu.memory_space<vmem>>, vector<1x128xf32>
    tpu.vector_store %arg20[%c2_11, %c0_12], %19 {strides = array<i32>} : memref<8x128xf32, #tpu.memory_space<vmem>>, vector<1x128xf32>,
    %c1_i32_13 = arith.constant 1 : i32
    %21 = arith.muli %arg0, %c1_i32_13 : i32
    %c0_i32_14 = arith.constant 0 : i32
    %22 = arith.addi %21, %c0_i32_14 : i32
    %23 = arith.index_cast %22 : i32 to index
    %c3 = arith.constant 3 : index
    %24 = memref.load %arg1[%23, %c3] : memref<2x8xi32, #tpu.memory_space<smem>>
    %25 = arith.index_cast %24 : i32 to index
    %c0_15 = arith.constant 0 : index
    %26 = vector.load %arg2[%25, %c0_15] : memref<64x128xf32, #tpu.memory_space<vmem>>, vector<1x128xf32>
    %c3_16 = arith.constant 3 : index
    %c0_17 = arith.constant 0 : index
    %27 = vector.load %arg20[%c3_16, %c0_17] : memref<8x128xf32, #tpu.memory_space<vmem>>, vector<1x128xf32>
    tpu.vector_store %arg20[%c3_16, %c0_17], %26 {strides = array<i32>} : memref<8x128xf32, #tpu.memory_space<vmem>>, vector<1x128xf32>,
    %c1_i32_18 = arith.constant 1 : i32
    %28 = arith.muli %arg0, %c1_i32_18 : i32
    %c0_i32_19 = arith.constant 0 : i32
    %29 = arith.addi %28, %c0_i32_19 : i32
    %30 = arith.index_cast %29 : i32 to index
    %c4 = arith.constant 4 : index
    %31 = memref.load %arg1[%30, %c4] : memref<2x8xi32, #tpu.memory_space<smem>>
    %32 = arith.index_cast %31 : i32 to index
    %c0_20 = arith.constant 0 : index
    %33 = vector.load %arg2[%32, %c0_20] : memref<64x128xf32, #tpu.memory_space<vmem>>, vector<1x128xf32>
    %c4_21 = arith.constant 4 : index
    %c0_22 = arith.constant 0 : index
    %34 = vector.load %arg20[%c4_21, %c0_22] : memref<8x128xf32, #tpu.memory_space<vmem>>, vector<1x128xf32>
    tpu.vector_store %arg20[%c4_21, %c0_22], %33 {strides = array<i32>} : memref<8x128xf32, #tpu.memory_space<vmem>>, vector<1x128xf32>,
    %c1_i32_23 = arith.constant 1 : i32
    %35 = arith.muli %arg0, %c1_i32_23 : i32
    %c0_i32_24 = arith.constant 0 : i32
    %36 = arith.addi %35, %c0_i32_24 : i32
    %37 = arith.index_cast %36 : i32 to index
    %c5 = arith.constant 5 : index
    %38 = memref.load %arg1[%37, %c5] : memref<2x8xi32, #tpu.memory_space<smem>>
    %39 = arith.index_cast %38 : i32 to index
    %c0_25 = arith.constant 0 : index
    %40 = vector.load %arg2[%39, %c0_25] : memref<64x128xf32, #tpu.memory_space<vmem>>, vector<1x128xf32>
    %c5_26 = arith.constant 5 : index
    %c0_27 = arith.constant 0 : index
    %41 = vector.load %arg20[%c5_26, %c0_27] : memref<8x128xf32, #tpu.memory_space<vmem>>, vector<1x128xf32>
    tpu.vector_store %arg20[%c5_26, %c0_27], %40 {strides = array<i32>} : memref<8x128xf32, #tpu.memory_space<vmem>>, vector<1x128xf32>,
    %c1_i32_28 = arith.constant 1 : i32
    %42 = arith.muli %arg0, %c1_i32_28 : i32
    %c0_i32_29 = arith.constant 0 : i32
    %43 = arith.addi %42, %c0_i32_29 : i32
    %44 = arith.index_cast %43 : i32 to index
    %c6 = arith.constant 6 : index
    %45 = memref.load %arg1[%44, %c6] : memref<2x8xi32, #tpu.memory_space<smem>>
    %46 = arith.index_cast %45 : i32 to index
    %c0_30 = arith.constant 0 : index
    %47 = vector.load %arg2[%46, %c0_30] : memref<64x128xf32, #tpu.memory_space<vmem>>, vector<1x128xf32>
    %c6_31 = arith.constant 6 : index
    %c0_32 = arith.constant 0 : index
    %48 = vector.load %arg20[%c6_31, %c0_32] : memref<8x128xf32, #tpu.memory_space<vmem>>, vector<1x128xf32>
    tpu.vector_store %arg20[%c6_31, %c0_32], %47 {strides = array<i32>} : memref<8x128xf32, #tpu.memory_space<vmem>>, vector<1x128xf32>,
    %c1_i32_33 = arith.constant 1 : i32
    %49 = arith.muli %arg0, %c1_i32_33 : i32
    %c0_i32_34 = arith.constant 0 : i32
    %50 = arith.addi %49, %c0_i32_34 : i32
    %51 = arith.index_cast %50 : i32 to index
    %c7 = arith.constant 7 : index
    %52 = memref.load %arg1[%51, %c7] : memref<2x8xi32, #tpu.memory_space<smem>>
    %53 = arith.index_cast %52 : i32 to index
    %c0_35 = arith.constant 0 : index
    %54 = vector.load %arg2[%53, %c0_35] : memref<64x128xf32, #tpu.memory_space<vmem>>, vector<1x128xf32>
    %c7_36 = arith.constant 7 : index
    %c0_37 = arith.constant 0 : index
    %55 = vector.load %arg20[%c7_36, %c0_37] : memref<8x128xf32, #tpu.memory_space<vmem>>, vector<1x128xf32>
    tpu.vector_store %arg20[%c7_36, %c0_37], %54 {strides = array<i32>} : memref<8x128xf32, #tpu.memory_space<vmem>>, vector<1x128xf32>,
    %c0_38 = arith.constant 0 : index
    %c0_39 = arith.constant 0 : index
    %56 = vector.load %arg20[%c0_38, %c0_39] : memref<8x128xf32, #tpu.memory_space<vmem>>, vector<8x128xf32>
    %c0_40 = arith.constant 0 : index
    %c0_41 = arith.constant 0 : index
    %c0_42 = arith.constant 0 : index
    %57 = vector.load %arg3[%c0_40, %c0_41, %c0_42] : memref<1x1x64xf32, #tpu.memory_space<vmem>>, vector<1x1x64xf32>
    %58 = vector.shape_cast %57 : vector<1x1x64xf32> to vector<1x64xf32>
    %c0_43 = arith.constant 0 : index
    %c0_44 = arith.constant 0 : index
    %59 = vector.load %arg5[%c0_43, %c0_44] : memref<64x128xf32, #tpu.memory_space<vmem>>, vector<64x128xf32>
    %cst = arith.constant dense<0.000000e+00> : vector<1x128xf32>
    %60 = tpu.matmul %58, %59, %cst {dimension_numbers = #tpu.dot_dimension_numbers<[1], [0], [0], [1], [0, 0, 1, 1], [], []>} : vector<1x64xf32>, vector<64x128xf32>, vector<1x128xf32> -> vector<1x128xf32>
    %c0_45 = arith.constant 0 : index
    %c0_46 = arith.constant 0 : index
    %61 = vector.load %arg6[%c0_45, %c0_46] : memref<1x128xf32, #tpu.memory_space<vmem>>, vector<1x128xf32>
    %62 = arith.addf %60, %61 : vector<1x128xf32>
    %63 = vector.shape_cast %62 : vector<1x128xf32> to vector<1x1x128xf32>
    %64 = vector.shape_cast %63 : vector<1x1x128xf32> to vector<1x1x128xf32>
    %65 = vector.broadcast %64 : vector<1x1x128xf32> to vector<1x8x128xf32>
    %66 = vector.shape_cast %65 : vector<1x8x128xf32> to vector<8x128xf32>
    %c0_47 = arith.constant 0 : index
    %c0_48 = arith.constant 0 : index
    %67 = vector.load %arg7[%c0_47, %c0_48] : memref<1x128xf32, #tpu.memory_space<vmem>>, vector<1x128xf32>
    %68 = vector.broadcast %67 : vector<1x128xf32> to vector<8x128xf32>
    %69 = arith.mulf %56, %68 : vector<8x128xf32>
    %cst_49 = arith.constant dense<0.000000e+00> : vector<8xf32>
    %70 = vector.multi_reduction <add>, %69, %cst_49 [1] : vector<8x128xf32> to vector<8xf32>
    %71 = vector.shape_cast %70 : vector<8xf32> to vector<8x1xf32>
    %c0_50 = arith.constant 0 : index
    %c0_51 = arith.constant 0 : index
    %72 = vector.load %arg8[%c0_50, %c0_51] : memref<1x128xf32, #tpu.memory_space<vmem>>, vector<1x128xf32>
    %73 = arith.mulf %62, %72 : vector<1x128xf32>
    %cst_52 = arith.constant dense<0.000000e+00> : vector<1xf32>
    %74 = vector.multi_reduction <add>, %73, %cst_52 [1] : vector<1x128xf32> to vector<1xf32>
    %75 = vector.shape_cast %74 : vector<1xf32> to vector<1x1xf32>
    %76 = vector.shape_cast %75 : vector<1x1xf32> to vector<1x1x1xf32>
    %77 = vector.shape_cast %76 : vector<1x1x1xf32> to vector<1x1x1xf32>
    %78 = vector.broadcast %77 : vector<1x1x1xf32> to vector<1x8x1xf32>
    %79 = vector.shape_cast %78 : vector<1x8x1xf32> to vector<8x1xf32>
    %80 = arith.addf %71, %79 : vector<8x1xf32>
    %c0_53 = arith.constant 0 : index
    %c0_54 = arith.constant 0 : index
    %81 = vector.load %arg9[%c0_53, %c0_54] : memref<1x1xf32, #tpu.memory_space<vmem>>, vector<1x1xf32>
    %82 = vector.broadcast %81 : vector<1x1xf32> to vector<8x1xf32>
    %83 = arith.addf %80, %82 : vector<8x1xf32>
    %84 = arith.negf %83 : vector<8x1xf32>
    %85 = math.exp %84 : vector<8x1xf32>
    %cst_55 = arith.constant 1.000000e+00 : f32
    %86 = vector.broadcast %cst_55 : f32 to vector<8x1xf32>
    %87 = arith.addf %86, %85 : vector<8x1xf32>
    %88 = arith.divf %86, %87 : vector<8x1xf32>
    %cst_56 = arith.constant 1.000000e+00 : f32
    %89 = vector.broadcast %cst_56 : f32 to vector<8x1xf32>
    %90 = arith.subf %89, %88 : vector<8x1xf32>
    %91 = vector.broadcast %90 : vector<8x1xf32> to vector<8x128xf32>
    %92 = arith.mulf %56, %91 : vector<8x128xf32>
    %93 = vector.broadcast %88 : vector<8x1xf32> to vector<8x128xf32>
    %94 = arith.mulf %66, %93 : vector<8x128xf32>
    %95 = arith.addf %92, %94 : vector<8x128xf32>
    %96 = arith.truncf %95 : vector<8x128xf32> to vector<8x128xbf16>
    %c0_57 = arith.constant 0 : index
    %c0_58 = arith.constant 0 : index
    %97 = vector.load %arg10[%c0_57, %c0_58] : memref<128x384xbf16, #tpu.memory_space<vmem>>, vector<128x384xbf16>
    %cst_59 = arith.constant dense<0.000000e+00> : vector<8x384xf32>
    %98 = tpu.matmul %96, %97, %cst_59 {dimension_numbers = #tpu.dot_dimension_numbers<[1], [0], [0], [1], [0, 0, 1, 1], [], []>} : vector<8x128xbf16>, vector<128x384xbf16>, vector<8x384xf32> -> vector<8x384xf32>
    %c0_60 = arith.constant 0 : index
    %c0_61 = arith.constant 0 : index
    %99 = vector.load %arg11[%c0_60, %c0_61] : memref<1x384xf32, #tpu.memory_space<vmem>>, vector<1x384xf32>
    %100 = vector.broadcast %99 : vector<1x384xf32> to vector<8x384xf32>
    %101 = arith.addf %98, %100 : vector<8x384xf32>
    %102 = vector.extract_strided_slice %101 {offsets = [0, 0], sizes = [8, 128], strides = [1, 1]} : vector<8x384xf32> to vector<8x128xf32>
    %103 = vector.shape_cast %102 : vector<8x128xf32> to vector<1x8x128xf32>
    %104 = vector.extract_strided_slice %101 {offsets = [0, 128], sizes = [8, 128], strides = [1, 1]} : vector<8x384xf32> to vector<8x128xf32>
    %105 = vector.shape_cast %104 : vector<8x128xf32> to vector<1x8x128xf32>
    %106 = vector.extract_strided_slice %101 {offsets = [0, 256], sizes = [8, 128], strides = [1, 1]} : vector<8x384xf32> to vector<8x128xf32>
    %107 = vector.shape_cast %106 : vector<8x128xf32> to vector<1x8x128xf32>
    %108 = arith.truncf %103 : vector<1x8x128xf32> to vector<1x8x128xbf16>
    %109 = arith.truncf %105 : vector<1x8x128xf32> to vector<1x8x128xbf16>
    %cst_62 = arith.constant dense<0.000000e+00> : vector<1x8x8xf32>
    %110 = tpu.matmul %108, %109, %cst_62 {dimension_numbers = #tpu.dot_dimension_numbers<[2], [2], [1], [1], [0, 0, 0, 1, 1, 1], [0], [0]>} : vector<1x8x128xbf16>, vector<1x8x128xbf16>, vector<1x8x8xf32> -> vector<1x8x8xf32>
    %c0_63 = arith.constant 0 : index
    %c0_64 = arith.constant 0 : index
    %c0_65 = arith.constant 0 : index
    %111 = vector.load %arg4[%c0_63, %c0_64, %c0_65] : memref<1x1x8xf32, #tpu.memory_space<vmem>>, vector<1x1x8xf32>
    %112 = vector.broadcast %111 : vector<1x1x8xf32> to vector<1x8x8xf32>
    %113 = arith.addf %110, %112 : vector<1x8x8xf32>
    %cst_66 = arith.constant dense<0xFF800000> : vector<1x8xf32>
    %114 = vector.multi_reduction <maximumf>, %113, %cst_66 [2] : vector<1x8x8xf32> to vector<1x8xf32>
    %115 = vector.shape_cast %114 : vector<1x8xf32> to vector<1x8x1xf32>
    %116 = vector.broadcast %115 : vector<1x8x1xf32> to vector<1x8x8xf32>
    %117 = arith.subf %113, %116 : vector<1x8x8xf32>
    %118 = math.exp %117 : vector<1x8x8xf32>
    %cst_67 = arith.constant dense<0.000000e+00> : vector<1x8xf32>
    %119 = vector.multi_reduction <add>, %118, %cst_67 [2] : vector<1x8x8xf32> to vector<1x8xf32>
    %120 = vector.shape_cast %119 : vector<1x8xf32> to vector<1x8x1xf32>
    %121 = tpu.reciprocal %120 {approx = true} : vector<1x8x1xf32> -> vector<1x8x1xf32>
    %122 = vector.broadcast %121 : vector<1x8x1xf32> to vector<1x8x8xf32>
    %123 = arith.mulf %118, %122 : vector<1x8x8xf32>
    %124 = arith.truncf %123 : vector<1x8x8xf32> to vector<1x8x8xbf16>
    %125 = arith.truncf %107 : vector<1x8x128xf32> to vector<1x8x128xbf16>
    %cst_68 = arith.constant dense<0.000000e+00> : vector<1x8x128xf32>
    %126 = tpu.matmul %124, %125, %cst_68 {dimension_numbers = #tpu.dot_dimension_numbers<[2], [1], [1], [2], [0, 0, 0, 1, 1, 2], [0], [0]>} : vector<1x8x8xbf16>, vector<1x8x128xbf16>, vector<1x8x128xf32> -> vector<1x8x128xf32>
    %127 = vector.shape_cast %126 : vector<1x8x128xf32> to vector<8x128xf32>
    %128 = arith.truncf %127 : vector<8x128xf32> to vector<8x128xbf16>
    %c0_69 = arith.constant 0 : index
    %c0_70 = arith.constant 0 : index
    %129 = vector.load %arg12[%c0_69, %c0_70] : memref<128x128xbf16, #tpu.memory_space<vmem>>, vector<128x128xbf16>
    %cst_71 = arith.constant dense<0.000000e+00> : vector<8x128xf32>
    %130 = tpu.matmul %128, %129, %cst_71 {dimension_numbers = #tpu.dot_dimension_numbers<[1], [0], [0], [1], [0, 0, 1, 1], [], []>} : vector<8x128xbf16>, vector<128x128xbf16>, vector<8x128xf32> -> vector<8x128xf32>
    %c0_72 = arith.constant 0 : index
    %c0_73 = arith.constant 0 : index
    %131 = vector.load %arg13[%c0_72, %c0_73] : memref<1x128xf32, #tpu.memory_space<vmem>>, vector<1x128xf32>
    %132 = vector.broadcast %131 : vector<1x128xf32> to vector<8x128xf32>
    %133 = arith.addf %130, %132 : vector<8x128xf32>
    %134 = arith.addf %95, %133 : vector<8x128xf32>
    %c0_74 = arith.constant 0 : index
    %c0_75 = arith.constant 0 : index
    %c0_76 = arith.constant 0 : index
    %135 = vector.load %arg14[%c0_74, %c0_75, %c0_76] : memref<4x1x128xf32, #tpu.memory_space<vmem>>, vector<1x1x128xf32>
    %136 = vector.shape_cast %135 : vector<1x1x128xf32> to vector<1x128xf32>
    %c1_77 = arith.constant 1 : index
    %c0_78 = arith.constant 0 : index
    %c0_79 = arith.constant 0 : index
    %137 = vector.load %arg14[%c1_77, %c0_78, %c0_79] : memref<4x1x128xf32, #tpu.memory_space<vmem>>, vector<1x1x128xf32>
    %138 = vector.shape_cast %137 : vector<1x1x128xf32> to vector<1x128xf32>
    %cst_80 = arith.constant dense<0.000000e+00> : vector<8xf32>
    %139 = vector.multi_reduction <add>, %134, %cst_80 [1] : vector<8x128xf32> to vector<8xf32>
    %140 = vector.shape_cast %139 : vector<8xf32> to vector<8x1xf32>
    %cst_81 = arith.constant 1.280000e+02 : f32
    %141 = vector.broadcast %cst_81 : f32 to vector<8x1xf32>
    %142 = arith.divf %140, %141 : vector<8x1xf32>
    %143 = vector.broadcast %142 : vector<8x1xf32> to vector<8x128xf32>
    %144 = arith.subf %134, %143 : vector<8x128xf32>
    %145 = arith.mulf %144, %144 : vector<8x128xf32>
    %cst_82 = arith.constant dense<0.000000e+00> : vector<8xf32>
    %146 = vector.multi_reduction <add>, %145, %cst_82 [1] : vector<8x128xf32> to vector<8xf32>
    %147 = vector.shape_cast %146 : vector<8xf32> to vector<8x1xf32>
    %cst_83 = arith.constant 1.280000e+02 : f32
    %148 = vector.broadcast %cst_83 : f32 to vector<8x1xf32>
    %149 = arith.divf %147, %148 : vector<8x1xf32>
    %150 = vector.broadcast %142 : vector<8x1xf32> to vector<8x128xf32>
    %151 = arith.subf %134, %150 : vector<8x128xf32>
    %cst_84 = arith.constant 9.99999974E-6 : f32
    %152 = vector.broadcast %cst_84 : f32 to vector<8x1xf32>
    %153 = arith.addf %149, %152 : vector<8x1xf32>
    %154 = math.rsqrt %153 : vector<8x1xf32>
    %155 = vector.broadcast %154 : vector<8x1xf32> to vector<8x128xf32>
    %156 = arith.mulf %151, %155 : vector<8x128xf32>
    %157 = vector.broadcast %136 : vector<1x128xf32> to vector<8x128xf32>
    %158 = arith.mulf %156, %157 : vector<8x128xf32>
    %159 = vector.broadcast %138 : vector<1x128xf32> to vector<8x128xf32>
    %160 = arith.addf %158, %159 : vector<8x128xf32>
    %161 = arith.truncf %160 : vector<8x128xf32> to vector<8x128xbf16>
    %c0_85 = arith.constant 0 : index
    %c0_86 = arith.constant 0 : index
    %162 = vector.load %arg15[%c0_85, %c0_86] : memref<128x256xbf16, #tpu.memory_space<vmem>>, vector<128x256xbf16>
    %cst_87 = arith.constant dense<0.000000e+00> : vector<8x256xf32>
    %163 = tpu.matmul %161, %162, %cst_87 {dimension_numbers = #tpu.dot_dimension_numbers<[1], [0], [0], [1], [0, 0, 1, 1], [], []>} : vector<8x128xbf16>, vector<128x256xbf16>, vector<8x256xf32> -> vector<8x256xf32>
    %c0_88 = arith.constant 0 : index
    %c0_89 = arith.constant 0 : index
    %164 = vector.load %arg16[%c0_88, %c0_89] : memref<1x256xf32, #tpu.memory_space<vmem>>, vector<1x256xf32>
    %165 = vector.broadcast %164 : vector<1x256xf32> to vector<8x256xf32>
    %166 = arith.addf %163, %165 : vector<8x256xf32>
    %167 = arith.mulf %166, %166 : vector<8x256xf32>
    %168 = arith.mulf %166, %167 : vector<8x256xf32>
    %cst_90 = arith.constant 4.471500e-02 : f32
    %169 = vector.broadcast %cst_90 : f32 to vector<8x256xf32>
    %170 = arith.mulf %169, %168 : vector<8x256xf32>
    %171 = arith.addf %166, %170 : vector<8x256xf32>
    %cst_91 = arith.constant 0.797884583 : f32
    %172 = vector.broadcast %cst_91 : f32 to vector<8x256xf32>
    %173 = arith.mulf %172, %171 : vector<8x256xf32>
    %174 = math.tanh %173 : vector<8x256xf32>
    %cst_92 = arith.constant 1.000000e+00 : f32
    %175 = vector.broadcast %cst_92 : f32 to vector<8x256xf32>
    %176 = arith.addf %175, %174 : vector<8x256xf32>
    %cst_93 = arith.constant 5.000000e-01 : f32
    %177 = vector.broadcast %cst_93 : f32 to vector<8x256xf32>
    %178 = arith.mulf %177, %176 : vector<8x256xf32>
    %179 = arith.mulf %166, %178 : vector<8x256xf32>
    %180 = arith.truncf %179 : vector<8x256xf32> to vector<8x256xbf16>
    %c0_94 = arith.constant 0 : index
    %c0_95 = arith.constant 0 : index
    %181 = vector.load %arg17[%c0_94, %c0_95] : memref<256x128xbf16, #tpu.memory_space<vmem>>, vector<256x128xbf16>
    %cst_96 = arith.constant dense<0.000000e+00> : vector<8x128xf32>
    %182 = tpu.matmul %180, %181, %cst_96 {dimension_numbers = #tpu.dot_dimension_numbers<[1], [0], [0], [1], [0, 0, 1, 1], [], []>} : vector<8x256xbf16>, vector<256x128xbf16>, vector<8x128xf32> -> vector<8x128xf32>
    %c0_97 = arith.constant 0 : index
    %c0_98 = arith.constant 0 : index
    %183 = vector.load %arg18[%c0_97, %c0_98] : memref<1x128xf32, #tpu.memory_space<vmem>>, vector<1x128xf32>
    %184 = vector.broadcast %183 : vector<1x128xf32> to vector<8x128xf32>
    %185 = arith.addf %182, %184 : vector<8x128xf32>
    %186 = arith.addf %160, %185 : vector<8x128xf32>
    %c2_99 = arith.constant 2 : index
    %c0_100 = arith.constant 0 : index
    %c0_101 = arith.constant 0 : index
    %187 = vector.load %arg14[%c2_99, %c0_100, %c0_101] : memref<4x1x128xf32, #tpu.memory_space<vmem>>, vector<1x1x128xf32>
    %188 = vector.shape_cast %187 : vector<1x1x128xf32> to vector<1x128xf32>
    %c3_102 = arith.constant 3 : index
    %c0_103 = arith.constant 0 : index
    %c0_104 = arith.constant 0 : index
    %189 = vector.load %arg14[%c3_102, %c0_103, %c0_104] : memref<4x1x128xf32, #tpu.memory_space<vmem>>, vector<1x1x128xf32>
    %190 = vector.shape_cast %189 : vector<1x1x128xf32> to vector<1x128xf32>
    %cst_105 = arith.constant dense<0.000000e+00> : vector<8xf32>
    %191 = vector.multi_reduction <add>, %186, %cst_105 [1] : vector<8x128xf32> to vector<8xf32>
    %192 = vector.shape_cast %191 : vector<8xf32> to vector<8x1xf32>
    %cst_106 = arith.constant 1.280000e+02 : f32
    %193 = vector.broadcast %cst_106 : f32 to vector<8x1xf32>
    %194 = arith.divf %192, %193 : vector<8x1xf32>
    %195 = vector.broadcast %194 : vector<8x1xf32> to vector<8x128xf32>
    %196 = arith.subf %186, %195 : vector<8x128xf32>
    %197 = arith.mulf %196, %196 : vector<8x128xf32>
    %cst_107 = arith.constant dense<0.000000e+00> : vector<8xf32>
    %198 = vector.multi_reduction <add>, %197, %cst_107 [1] : vector<8x128xf32> to vector<8xf32>
    %199 = vector.shape_cast %198 : vector<8xf32> to vector<8x1xf32>
    %cst_108 = arith.constant 1.280000e+02 : f32
    %200 = vector.broadcast %cst_108 : f32 to vector<8x1xf32>
    %201 = arith.divf %199, %200 : vector<8x1xf32>
    %202 = vector.broadcast %194 : vector<8x1xf32> to vector<8x128xf32>
    %203 = arith.subf %186, %202 : vector<8x128xf32>
    %cst_109 = arith.constant 9.99999974E-6 : f32
    %204 = vector.broadcast %cst_109 : f32 to vector<8x1xf32>
    %205 = arith.addf %201, %204 : vector<8x1xf32>
    %206 = math.rsqrt %205 : vector<8x1xf32>
    %207 = vector.broadcast %206 : vector<8x1xf32> to vector<8x128xf32>
    %208 = arith.mulf %203, %207 : vector<8x128xf32>
    %209 = vector.broadcast %188 : vector<1x128xf32> to vector<8x128xf32>
    %210 = arith.mulf %208, %209 : vector<8x128xf32>
    %211 = vector.broadcast %190 : vector<1x128xf32> to vector<8x128xf32>
    %212 = arith.addf %210, %211 : vector<8x128xf32>
    %213 = vector.shape_cast %212 : vector<8x128xf32> to vector<1x8x128xf32>
    %c0_110 = arith.constant 0 : index
    %c0_111 = arith.constant 0 : index
    %c0_112 = arith.constant 0 : index
    %214 = vector.load %arg19[%c0_110, %c0_111, %c0_112] : memref<1x8x128xf32, #tpu.memory_space<vmem>>, vector<1x8x128xf32>
    tpu.vector_store %arg19[%c0_110, %c0_111, %c0_112], %213 {strides = array<i32>} : memref<1x8x128xf32, #tpu.memory_space<vmem>>, vector<1x8x128xf32>,
    return
  }
  func.func @transform_0(%arg0: i32, %arg1: memref<2x8xi32, #tpu.memory_space<smem>>) -> (i32, i32) {
    %c0_i32 = arith.constant 0 : i32
    %c0_i32_0 = arith.constant 0 : i32
    %c0_i32_1 = arith.constant 0 : i32
    return %c0_i32, %c0_i32_0 : i32, i32
  }
  func.func @transform_1(%arg0: i32, %arg1: memref<2x8xi32, #tpu.memory_space<smem>>) -> (i32, i32, i32) {
    %c0_i32 = arith.constant 0 : i32
    %c0_i32_0 = arith.constant 0 : i32
    %c0_i32_1 = arith.constant 0 : i32
    return %arg0, %c0_i32, %c0_i32_0 : i32, i32, i32
  }
  func.func @transform_2(%arg0: i32, %arg1: memref<2x8xi32, #tpu.memory_space<smem>>) -> (i32, i32, i32) {
    %c0_i32 = arith.constant 0 : i32
    %c0_i32_0 = arith.constant 0 : i32
    %c0_i32_1 = arith.constant 0 : i32
    return %arg0, %c0_i32, %c0_i32_0 : i32, i32, i32
  }
  func.func @transform_3(%arg0: i32, %arg1: memref<2x8xi32, #tpu.memory_space<smem>>) -> (i32, i32) {
    %c0_i32 = arith.constant 0 : i32
    %c0_i32_0 = arith.constant 0 : i32
    %c0_i32_1 = arith.constant 0 : i32
    return %c0_i32, %c0_i32_0 : i32, i32
  }
  func.func @transform_4(%arg0: i32, %arg1: memref<2x8xi32, #tpu.memory_space<smem>>) -> (i32, i32) {
    %c0_i32 = arith.constant 0 : i32
    %c0_i32_0 = arith.constant 0 : i32
    %c0_i32_1 = arith.constant 0 : i32
    return %c0_i32, %c0_i32_0 : i32, i32
  }
  func.func @transform_5(%arg0: i32, %arg1: memref<2x8xi32, #tpu.memory_space<smem>>) -> (i32, i32) {
    %c0_i32 = arith.constant 0 : i32
    %c0_i32_0 = arith.constant 0 : i32
    %c0_i32_1 = arith.constant 0 : i32
    return %c0_i32, %c0_i32_0 : i32, i32
  }
  func.func @transform_6(%arg0: i32, %arg1: memref<2x8xi32, #tpu.memory_space<smem>>) -> (i32, i32) {
    %c0_i32 = arith.constant 0 : i32
    %c0_i32_0 = arith.constant 0 : i32
    %c0_i32_1 = arith.constant 0 : i32
    return %c0_i32, %c0_i32_0 : i32, i32
  }
  func.func @transform_7(%arg0: i32, %arg1: memref<2x8xi32, #tpu.memory_space<smem>>) -> (i32, i32) {
    %c0_i32 = arith.constant 0 : i32
    %c0_i32_0 = arith.constant 0 : i32
    %c0_i32_1 = arith.constant 0 : i32
    return %c0_i32, %c0_i32_0 : i32, i32
  }
  func.func @transform_8(%arg0: i32, %arg1: memref<2x8xi32, #tpu.memory_space<smem>>) -> (i32, i32) {
    %c0_i32 = arith.constant 0 : i32
    %c0_i32_0 = arith.constant 0 : i32
    %c0_i32_1 = arith.constant 0 : i32
    return %c0_i32, %c0_i32_0 : i32, i32
  }
  func.func @transform_9(%arg0: i32, %arg1: memref<2x8xi32, #tpu.memory_space<smem>>) -> (i32, i32) {
    %c0_i32 = arith.constant 0 : i32
    %c0_i32_0 = arith.constant 0 : i32
    %c0_i32_1 = arith.constant 0 : i32
    return %c0_i32, %c0_i32_0 : i32, i32
  }
  func.func @transform_10(%arg0: i32, %arg1: memref<2x8xi32, #tpu.memory_space<smem>>) -> (i32, i32) {
    %c0_i32 = arith.constant 0 : i32
    %c0_i32_0 = arith.constant 0 : i32
    %c0_i32_1 = arith.constant 0 : i32
    return %c0_i32, %c0_i32_0 : i32, i32
  }
  func.func @transform_11(%arg0: i32, %arg1: memref<2x8xi32, #tpu.memory_space<smem>>) -> (i32, i32) {
    %c0_i32 = arith.constant 0 : i32
    %c0_i32_0 = arith.constant 0 : i32
    %c0_i32_1 = arith.constant 0 : i32
    return %c0_i32, %c0_i32_0 : i32, i32
  }
  func.func @transform_12(%arg0: i32, %arg1: memref<2x8xi32, #tpu.memory_space<smem>>) -> (i32, i32, i32) {
    %c0_i32 = arith.constant 0 : i32
    %c0_i32_0 = arith.constant 0 : i32
    %c0_i32_1 = arith.constant 0 : i32
    %c0_i32_2 = arith.constant 0 : i32
    return %c0_i32, %c0_i32_0, %c0_i32_1 : i32, i32, i32
  }
  func.func @transform_13(%arg0: i32, %arg1: memref<2x8xi32, #tpu.memory_space<smem>>) -> (i32, i32) {
    %c0_i32 = arith.constant 0 : i32
    %c0_i32_0 = arith.constant 0 : i32
    %c0_i32_1 = arith.constant 0 : i32
    return %c0_i32, %c0_i32_0 : i32, i32
  }
  func.func @transform_14(%arg0: i32, %arg1: memref<2x8xi32, #tpu.memory_space<smem>>) -> (i32, i32) {
    %c0_i32 = arith.constant 0 : i32
    %c0_i32_0 = arith.constant 0 : i32
    %c0_i32_1 = arith.constant 0 : i32
    return %c0_i32, %c0_i32_0 : i32, i32
  }
  func.func @transform_15(%arg0: i32, %arg1: memref<2x8xi32, #tpu.memory_space<smem>>) -> (i32, i32) {
    %c0_i32 = arith.constant 0 : i32
    %c0_i32_0 = arith.constant 0 : i32
    %c0_i32_1 = arith.constant 0 : i32
    return %c0_i32, %c0_i32_0 : i32, i32
  }
  func.func @transform_16(%arg0: i32, %arg1: memref<2x8xi32, #tpu.memory_space<smem>>) -> (i32, i32) {
    %c0_i32 = arith.constant 0 : i32
    %c0_i32_0 = arith.constant 0 : i32
    %c0_i32_1 = arith.constant 0 : i32
    return %c0_i32, %c0_i32_0 : i32, i32
  }
  func.func @transform_17(%arg0: i32, %arg1: memref<2x8xi32, #tpu.memory_space<smem>>) -> (i32, i32, i32) {
    %c0_i32 = arith.constant 0 : i32
    %c0_i32_0 = arith.constant 0 : i32
    %c0_i32_1 = arith.constant 0 : i32
    return %arg0, %c0_i32, %c0_i32_0 : i32, i32, i32
  }
}

</mosaic_0001>

<llo_original>
// kernel: tpu_custom_call.1
$region0: #{tpu_custom_call.1}
  #allocation0 [shape = 'u32[]', space=smem, size = 0x4, offset = 0x4, fixed_abs, tag = 'smem constant byte address 0x4 - core index']
  #allocation1 [shape = 'u32[72,128]{1,0:T(1,128)}', space=vmem, size = 0x9000, scoped, tag = 'internal scratch']
  #allocation2 [shape = 'f32[8,128]{1,0:T(8,128)}', space=vmem, size = 0x1000, scoped, tag = 'scratch operand']
  #allocation3 [shape = 's32[1]{0}', space=sflag, size = 0x4, scoped, tag = 'scoped memory for tpu_custom_call.1']
  #allocation4 [shape = 'u8[1024]{0}', space=smem, size = 0x400, scoped, tag = 'prefetched SMEM operand 0']
  #allocation5 [shape = 'f32[1,1]{1,0:T(1,128)S(1)}', space=vmem, size = 0x200, scoped, tag = 'scoped memory for tpu_custom_call.1']
  %s0 = inlined_call_operand.hbm [shape: s32[2,8], index: 0, kind: input, shape index: {}]
  %s1 = inlined_call_operand.hbm [shape: f32[64,128], index: 1, kind: input, shape index: {}]
  %s2 = inlined_call_operand.hbm [shape: f32[2,1,64], index: 2, kind: input, shape index: {}]
  %s3 = inlined_call_operand.hbm [shape: f32[2,1,8], index: 3, kind: input, shape index: {}]
  %s4 = inlined_call_operand.hbm [shape: f32[64,128], index: 4, kind: input, shape index: {}]
  %s5 = inlined_call_operand.hbm [shape: f32[1,128], index: 5, kind: input, shape index: {}]
  %s6 = inlined_call_operand.hbm [shape: f32[1,128], index: 6, kind: input, shape index: {}]
  %s7 = inlined_call_operand.hbm [shape: f32[1,128], index: 7, kind: input, shape index: {}]
  %s8 = inlined_call_operand.<no memory space> [shape: f32[1,1], index: 8, kind: input, shape index: {}]
  %s9 = inlined_call_operand.hbm [shape: bf16[128,384], index: 9, kind: input, shape index: {}]
  %s10 = inlined_call_operand.vmem [shape: f32[1,384], index: 10, kind: input, shape index: {}]
  %s11 = inlined_call_operand.hbm [shape: bf16[128,128], index: 11, kind: input, shape index: {}]
  %s12 = inlined_call_operand.vmem [shape: f32[1,128], index: 12, kind: input, shape index: {}]
  %s13 = inlined_call_operand.vmem [shape: f32[4,1,128], index: 13, kind: input, shape index: {}]
  %s14 = inlined_call_operand.hbm [shape: bf16[128,256], index: 14, kind: input, shape index: {}]
  %s15 = inlined_call_operand.vmem [shape: f32[1,256], index: 15, kind: input, shape index: {}]
  %s16 = inlined_call_operand.hbm [shape: bf16[256,128], index: 16, kind: input, shape index: {}]
  %s17 = inlined_call_operand.vmem [shape: f32[1,128], index: 17, kind: input, shape index: {}]
  %s18 = inlined_call_operand.hbm [shape: f32[2,8,128], index: 18, kind: output, shape index: {}]
  %s19 = sld [smem:[#allocation0]]
  $region145: #{tpu_custom_call.1} parent=0
    _
  %s21 = ssub.s32 1, %s19
  %s22 = scalar_select 0, %s21, %s19
  %s24 = sshll.u32 %s0, 4
  %s25 = int_to_ptr.hbm [resolvable:$true] %s24
  %27 = dma.hbm_to_smem %s25, 32, [#allocation4], [#allocation3]
  %v28 = vstv %s8
  %29 = vst [vmem:[#allocation5] sm:$0x1] %v28
  %31 = dma.done [#allocation3], 32
  %32 = sfence
  $region1: #{tpu_custom_call.1} parent=0
    #allocation6 [shape = 'u8[32768]{0}', space=vmem, size = 0x8000, scoped, tag = 'input window, operand 1, single buffered']
    #allocation7 [shape = 's32[2]{0}', space=sflag, size = 0x8, scoped, tag = 'scoped memory for tpu_custom_call.1']
    #allocation8 [shape = 's32[2]{0}', space=sflag, size = 0x8, scoped, tag = 'scoped memory for tpu_custom_call.1']
    #allocation9 [shape = 'u8[1024]{0}', space=vmem, size = 0x400, scoped, tag = 'input window, operand 2']
    #allocation10 [shape = 's32[2]{0}', space=sflag, size = 0x8, scoped, tag = 'scoped memory for tpu_custom_call.1']
    #allocation11 [shape = 'u8[1024]{0}', space=vmem, size = 0x400, scoped, tag = 'input window, operand 3']
    #allocation12 [shape = 'u8[32768]{0}', space=vmem, size = 0x8000, scoped, tag = 'input window, operand 4, single buffered']
    #allocation13 [shape = 's32[1]{0}', space=sflag, size = 0x4, scoped, tag = 'scoped memory for tpu_custom_call.1']
    #allocation14 [shape = 'u8[512]{0}', space=vmem, size = 0x400, scoped, tag = 'input window, operand 5, single buffered']
    #allocation15 [shape = 'u8[512]{0}', space=vmem, size = 0x400, scoped, tag = 'input window, operand 6, single buffered']
    #allocation16 [shape = 's32[1]{0}', space=sflag, size = 0x4, scoped, tag = 'scoped memory for tpu_custom_call.1']
    #allocation17 [shape = 'u8[512]{0}', space=vmem, size = 0x400, scoped, tag = 'input window, operand 7, single buffered']
    #allocation18 [shape = 'u8[98304]{0}', space=vmem, size = 0x18000, scoped, tag = 'input window, operand 9, single buffered']
    #allocation19 [shape = 's32[1]{0}', space=sflag, size = 0x4, scoped, tag = 'scoped memory for tpu_custom_call.1']
    #allocation20 [shape = 'u8[32768]{0}', space=vmem, size = 0x8000, scoped, tag = 'input window, operand 11, single buffered']
    #allocation21 [shape = 'u8[65536]{0}', space=vmem, size = 0x10000, scoped, tag = 'input window, operand 14, single buffered']
    #allocation22 [shape = 's32[1]{0}', space=sflag, size = 0x4, scoped, tag = 'scoped memory for tpu_custom_call.1']
    #allocation23 [shape = 'u8[65536]{0}', space=vmem, size = 0x10000, scoped, tag = 'input window, operand 16, single buffered']
    #allocation24 [shape = 'u8[8192]{0}', space=vmem, size = 0x2000, scoped, tag = 'output window, operand 0']
    %33 = vsyncpa [#allocation7], 0
    %34 = vsyncpa [#allocation10], 0
    %s35 = scalar_lea.sflag [#allocation10], 1
    %36 = vsyncpa %s35, 0
    %37 = vsyncpa [#allocation13], 0
    %38 = vsyncpa [#allocation16], 0
    %39 = vsyncpa [#allocation19], 0
    %40 = vsyncpa [#allocation22], 0
    %41 = vsyncpa [#allocation8], 0
    %s42 = scalar_lea.sflag [#allocation8], 1
    %43 = vsyncpa %s42, 0
    loop: start=0, step=1, limit=4
    $region2: #{tpu_custom_call.1} parent=1 // loop_pre_header
      _
    $region3: #{tpu_custom_call.1} parent=1 // loop_header
      %s45 = sphi 0, %s49
      %p46 = scmp.ge.s32.totalorder %s45, 4
      %s53 = sphi 0, %s53
      %s55 = sphi 0, %s53
      %s56 = sphi 0, %s55
      %s70 = sphi 0, %s56
      %s76 = sphi 0, %s78
      %s79 = sphi 0, %s76
      %s80 = sphi 0, %s79
      %s96 = sphi 0, %s80
      %s102 = sphi 0, %s104
      %s105 = sphi 0, %s102
      %s106 = sphi 0, %s105
      %s122 = sphi 0, %s106
      %s126 = sphi 0, %s126
      %s128 = sphi 0, %s126
      %s129 = sphi 0, %s128
      %s143 = sphi 0, %s129
      %s147 = sphi 0, %s147
      %s149 = sphi 0, %s147
      %s150 = sphi 0, %s149
      %s164 = sphi 0, %s150
      %s168 = sphi 0, %s168
      %s170 = sphi 0, %s168
      %s171 = sphi 0, %s170
      %s185 = sphi 0, %s171
      %s189 = sphi 0, %s189
      %s191 = sphi 0, %s189
      %s192 = sphi 0, %s191
      %s206 = sphi 0, %s192
      %s210 = sphi 0, %s210
      %s212 = sphi 0, %s210
      %s213 = sphi 0, %s212
      %s227 = sphi 0, %s213
      %s231 = sphi 0, %s231
      %s233 = sphi 0, %s231
      %s234 = sphi 0, %s233
      %s248 = sphi 0, %s234
      %s252 = sphi 0, %s252
      %s254 = sphi 0, %s252
      %s255 = sphi 0, %s254
      %s269 = sphi 0, %s255
      %s273 = sphi 0, %s273
      %s275 = sphi 0, %s273
      %s276 = sphi 0, %s275
      %s290 = sphi 0, %s276
      %s294 = sphi 0, %s294
      %s296 = sphi 0, %s294
      %s297 = sphi 0, %s296
      %s311 = sphi 0, %s297
      %s315 = sphi 0, %s315
      %s317 = sphi 0, %s315
      %s318 = sphi 0, %s317
      %s332 = sphi 0, %s318
      %s336 = sphi 0, %s336
      %s338 = sphi 0, %s336
      %s339 = sphi 0, %s338
      %s353 = sphi 0, %s339
      %s357 = sphi 0, %s357
      %s359 = sphi 0, %s357
      %s360 = sphi 0, %s359
      %s374 = sphi 0, %s360
      %s378 = sphi 0, %s378
      %s380 = sphi 0, %s378
      %s381 = sphi 0, %s380
      %s395 = sphi 0, %s381
      %s399 = sphi 0, %s399
      %s401 = sphi 0, %s399
      %s402 = sphi 0, %s401
      %s416 = sphi 0, %s402
      %s422 = sphi 0, %s424
      %s425 = sphi 0, %s422
      %s426 = sphi 0, %s425
      %s442 = sphi 0, %s426
    $region4: #{tpu_custom_call.1} parent=1 // loop_header_branch
      %48 = sbr.rel (%p46) target = $region8
    $region5: #{tpu_custom_call.1} parent=1 // loop_body
      %s50 = ssub.s32 %s45, 1
      %s51 = ssub.s32 %s45, 2
      %s52 = sadd.s32 %s45, 1
      %s54 = sadd.s32 %s53, 1
      %p57 = scmp.eq.s32.totalorder %s45, 1
      %p58 = scmp.ne.s32.totalorder %s53, %s55
      %p59 = scmp.eq.s32.totalorder %s45, 0
      %p60 = por %p58, %p59
      %p61 = scmp.ne.s32.totalorder %s53, %s55
      %p62 = scmp.eq.s32.totalorder %s50, 1
      %p63 = por %p61, %p62
      %p64 = scmp.ne.s32.totalorder %s55, %s56
      %p65 = scmp.eq.s32.totalorder %s50, 0
      %p66 = por %p64, %p65
      %p67 = scmp.ne.s32.totalorder %s55, %s56
      %p68 = scmp.eq.s32.totalorder %s51, 1
      %p69 = por %p67, %p68
      %p71 = scmp.ne.s32.totalorder %s56, %s70
      %p72 = scmp.eq.s32.totalorder %s51, 0
      %p73 = por %p71, %p72
      %s74 = ssub.s32 %s45, %s52
      %p75 = scmp.eq.s32.totalorder %s74, 0
      %s77 = sadd.s32 %s76, 1
      %s78 = scalar_select %p75, %s76, %s77
      %p81 = pneg %p75
      %p82 = scmp.eq.s32.totalorder %s45, 1
      %p83 = por %p81, %p82
      %p84 = scmp.ne.s32.totalorder %s76, %s79
      %p85 = scmp.eq.s32.totalorder %s45, 0
      %p86 = por %p84, %p85
      %p87 = scmp.ne.s32.totalorder %s76, %s79
      %p88 = scmp.eq.s32.totalorder %s50, 1
      %p89 = por %p87, %p88
      %p90 = scmp.ne.s32.totalorder %s79, %s80
      %p91 = scmp.eq.s32.totalorder %s50, 0
      %p92 = por %p90, %p91
      %p93 = scmp.ne.s32.totalorder %s79, %s80
      %p94 = scmp.eq.s32.totalorder %s51, 1
      %p95 = por %p93, %p94
      %p97 = scmp.ne.s32.totalorder %s80, %s96
      %p98 = scmp.eq.s32.totalorder %s51, 0
      %p99 = por %p97, %p98
      %s100 = ssub.s32 %s45, %s52
      %p101 = scmp.eq.s32.totalorder %s100, 0
      %s103 = sadd.s32 %s102, 1
      %s104 = scalar_select %p101, %s102, %s103
      %p107 = pneg %p101
      %p108 = scmp.eq.s32.totalorder %s45, 1
      %p109 = por %p107, %p108
      %p110 = scmp.ne.s32.totalorder %s102, %s105
      %p111 = scmp.eq.s32.totalorder %s45, 0
      %p112 = por %p110, %p111
      %p113 = scmp.ne.s32.totalorder %s102, %s105
      %p114 = scmp.eq.s32.totalorder %s50, 1
      %p115 = por %p113, %p114
      %p116 = scmp.ne.s32.totalorder %s105, %s106
      %p117 = scmp.eq.s32.totalorder %s50, 0
      %p118 = por %p116, %p117
      %p119 = scmp.ne.s32.totalorder %s105, %s106
      %p120 = scmp.eq.s32.totalorder %s51, 1
      %p121 = por %p119, %p120
      %p123 = scmp.ne.s32.totalorder %s106, %s122
      %p124 = scmp.eq.s32.totalorder %s51, 0
      %p125 = por %p123, %p124
      %s127 = sadd.s32 %s126, 1
      %p130 = scmp.eq.s32.totalorder %s45, 1
      %p131 = scmp.ne.s32.totalorder %s126, %s128
      %p132 = scmp.eq.s32.totalorder %s45, 0
      %p133 = por %p131, %p132
      %p134 = scmp.ne.s32.totalorder %s126, %s128
      %p135 = scmp.eq.s32.totalorder %s50, 1
      %p136 = por %p134, %p135
      %p137 = scmp.ne.s32.totalorder %s128, %s129
      %p138 = scmp.eq.s32.totalorder %s50, 0
      %p139 = por %p137, %p138
      %p140 = scmp.ne.s32.totalorder %s128, %s129
      %p141 = scmp.eq.s32.totalorder %s51, 1
      %p142 = por %p140, %p141
      %p144 = scmp.ne.s32.totalorder %s129, %s143
      %p145 = scmp.eq.s32.totalorder %s51, 0
      %p146 = por %p144, %p145
      %s148 = sadd.s32 %s147, 1
      %p151 = scmp.eq.s32.totalorder %s45, 1
      %p152 = scmp.ne.s32.totalorder %s147, %s149
      %p153 = scmp.eq.s32.totalorder %s45, 0
      %p154 = por %p152, %p153
      %p155 = scmp.ne.s32.totalorder %s147, %s149
      %p156 = scmp.eq.s32.totalorder %s50, 1
      %p157 = por %p155, %p156
      %p158 = scmp.ne.s32.totalorder %s149, %s150
      %p159 = scmp.eq.s32.totalorder %s50, 0
      %p160 = por %p158, %p159
      %p161 = scmp.ne.s32.totalorder %s149, %s150
      %p162 = scmp.eq.s32.totalorder %s51, 1
      %p163 = por %p161, %p162
      %p165 = scmp.ne.s32.totalorder %s150, %s164
      %p166 = scmp.eq.s32.totalorder %s51, 0
      %p167 = por %p165, %p166
      %s169 = sadd.s32 %s168, 1
      %p172 = scmp.eq.s32.totalorder %s45, 1
      %p173 = scmp.ne.s32.totalorder %s168, %s170
      %p174 = scmp.eq.s32.totalorder %s45, 0
      %p175 = por %p173, %p174
      %p176 = scmp.ne.s32.totalorder %s168, %s170
      %p177 = scmp.eq.s32.totalorder %s50, 1
      %p178 = por %p176, %p177
      %p179 = scmp.ne.s32.totalorder %s170, %s171
      %p180 = scmp.eq.s32.totalorder %s50, 0
      %p181 = por %p179, %p180
      %p182 = scmp.ne.s32.totalorder %s170, %s171
      %p183 = scmp.eq.s32.totalorder %s51, 1
      %p184 = por %p182, %p183
      %p186 = scmp.ne.s32.totalorder %s171, %s185
      %p187 = scmp.eq.s32.totalorder %s51, 0
      %p188 = por %p186, %p187
      %s190 = sadd.s32 %s189, 1
      %p193 = scmp.eq.s32.totalorder %s45, 1
      %p194 = scmp.ne.s32.totalorder %s189, %s191
      %p195 = scmp.eq.s32.totalorder %s45, 0
      %p196 = por %p194, %p195
      %p197 = scmp.ne.s32.totalorder %s189, %s191
      %p198 = scmp.eq.s32.totalorder %s50, 1
      %p199 = por %p197, %p198
      %p200 = scmp.ne.s32.totalorder %s191, %s192
      %p201 = scmp.eq.s32.totalorder %s50, 0
      %p202 = por %p200, %p201
      %p203 = scmp.ne.s32.totalorder %s191, %s192
      %p204 = scmp.eq.s32.totalorder %s51, 1
      %p205 = por %p203, %p204
      %p207 = scmp.ne.s32.totalorder %s192, %s206
      %p208 = scmp.eq.s32.totalorder %s51, 0
      %p209 = por %p207, %p208
      %s211 = sadd.s32 %s210, 1
      %p214 = scmp.eq.s32.totalorder %s45, 1
      %p215 = scmp.ne.s32.totalorder %s210, %s212
      %p216 = scmp.eq.s32.totalorder %s45, 0
      %p217 = por %p215, %p216
      %p218 = scmp.ne.s32.totalorder %s210, %s212
      %p219 = scmp.eq.s32.totalorder %s50, 1
      %p220 = por %p218, %p219
      %p221 = scmp.ne.s32.totalorder %s212, %s213
      %p222 = scmp.eq.s32.totalorder %s50, 0
      %p223 = por %p221, %p222
      %p224 = scmp.ne.s32.totalorder %s212, %s213
      %p225 = scmp.eq.s32.totalorder %s51, 1
      %p226 = por %p224, %p225
      %p228 = scmp.ne.s32.totalorder %s213, %s227
      %p229 = scmp.eq.s32.totalorder %s51, 0
      %p230 = por %p228, %p229
      %s232 = sadd.s32 %s231, 1
      %p235 = scmp.eq.s32.totalorder %s45, 1
      %p236 = scmp.ne.s32.totalorder %s231, %s233
      %p237 = scmp.eq.s32.totalorder %s45, 0
      %p238 = por %p236, %p237
      %p239 = scmp.ne.s32.totalorder %s231, %s233
      %p240 = scmp.eq.s32.totalorder %s50, 1
      %p241 = por %p239, %p240
      %p242 = scmp.ne.s32.totalorder %s233, %s234
      %p243 = scmp.eq.s32.totalorder %s50, 0
      %p244 = por %p242, %p243
      %p245 = scmp.ne.s32.totalorder %s233, %s234
      %p246 = scmp.eq.s32.totalorder %s51, 1
      %p247 = por %p245, %p246
      %p249 = scmp.ne.s32.totalorder %s234, %s248
      %p250 = scmp.eq.s32.totalorder %s51, 0
      %p251 = por %p249, %p250
      %s253 = sadd.s32 %s252, 1
      %p256 = scmp.eq.s32.totalorder %s45, 1
      %p257 = scmp.ne.s32.totalorder %s252, %s254
      %p258 = scmp.eq.s32.totalorder %s45, 0
      %p259 = por %p257, %p258
      %p260 = scmp.ne.s32.totalorder %s252, %s254
      %p261 = scmp.eq.s32.totalorder %s50, 1
      %p262 = por %p260, %p261
      %p263 = scmp.ne.s32.totalorder %s254, %s255
      %p264 = scmp.eq.s32.totalorder %s50, 0
      %p265 = por %p263, %p264
      %p266 = scmp.ne.s32.totalorder %s254, %s255
      %p267 = scmp.eq.s32.totalorder %s51, 1
      %p268 = por %p266, %p267
      %p270 = scmp.ne.s32.totalorder %s255, %s269
      %p271 = scmp.eq.s32.totalorder %s51, 0
      %p272 = por %p270, %p271
      %s274 = sadd.s32 %s273, 1
      %p277 = scmp.eq.s32.totalorder %s45, 1
      %p278 = scmp.ne.s32.totalorder %s273, %s275
      %p279 = scmp.eq.s32.totalorder %s45, 0
      %p280 = por %p278, %p279
      %p281 = scmp.ne.s32.totalorder %s273, %s275
      %p282 = scmp.eq.s32.totalorder %s50, 1
      %p283 = por %p281, %p282
      %p284 = scmp.ne.s32.totalorder %s275, %s276
      %p285 = scmp.eq.s32.totalorder %s50, 0
      %p286 = por %p284, %p285
      %p287 = scmp.ne.s32.totalorder %s275, %s276
      %p288 = scmp.eq.s32.totalorder %s51, 1
      %p289 = por %p287, %p288
      %p291 = scmp.ne.s32.totalorder %s276, %s290
      %p292 = scmp.eq.s32.totalorder %s51, 0
      %p293 = por %p291, %p292
      %s295 = sadd.s32 %s294, 1
      %p298 = scmp.eq.s32.totalorder %s45, 1
      %p299 = scmp.ne.s32.totalorder %s294, %s296
      %p300 = scmp.eq.s32.totalorder %s45, 0
      %p301 = por %p299, %p300
      %p302 = scmp.ne.s32.totalorder %s294, %s296
      %p303 = scmp.eq.s32.totalorder %s50, 1
      %p304 = por %p302, %p303
      %p305 = scmp.ne.s32.totalorder %s296, %s297
      %p306 = scmp.eq.s32.totalorder %s50, 0
      %p307 = por %p305, %p306
      %p308 = scmp.ne.s32.totalorder %s296, %s297
      %p309 = scmp.eq.s32.totalorder %s51, 1
      %p310 = por %p308, %p309
      %p312 = scmp.ne.s32.totalorder %s297, %s311
      %p313 = scmp.eq.s32.totalorder %s51, 0
      %p314 = por %p312, %p313
      %s316 = sadd.s32 %s315, 1
      %p319 = scmp.eq.s32.totalorder %s45, 1
      %p320 = scmp.ne.s32.totalorder %s315, %s317
      %p321 = scmp.eq.s32.totalorder %s45, 0
      %p322 = por %p320, %p321
      %p323 = scmp.ne.s32.totalorder %s315, %s317
      %p324 = scmp.eq.s32.totalorder %s50, 1
      %p325 = por %p323, %p324
      %p326 = scmp.ne.s32.totalorder %s317, %s318
      %p327 = scmp.eq.s32.totalorder %s50, 0
      %p328 = por %p326, %p327
      %p329 = scmp.ne.s32.totalorder %s317, %s318
      %p330 = scmp.eq.s32.totalorder %s51, 1
      %p331 = por %p329, %p330
      %p333 = scmp.ne.s32.totalorder %s318, %s332
      %p334 = scmp.eq.s32.totalorder %s51, 0
      %p335 = por %p333, %p334
      %s337 = sadd.s32 %s336, 1
      %p340 = scmp.eq.s32.totalorder %s45, 1
      %p341 = scmp.ne.s32.totalorder %s336, %s338
      %p342 = scmp.eq.s32.totalorder %s45, 0
      %p343 = por %p341, %p342
      %p344 = scmp.ne.s32.totalorder %s336, %s338
      %p345 = scmp.eq.s32.totalorder %s50, 1
      %p346 = por %p344, %p345
      %p347 = scmp.ne.s32.totalorder %s338, %s339
      %p348 = scmp.eq.s32.totalorder %s50, 0
      %p349 = por %p347, %p348
      %p350 = scmp.ne.s32.totalorder %s338, %s339
      %p351 = scmp.eq.s32.totalorder %s51, 1
      %p352 = por %p350, %p351
      %p354 = scmp.ne.s32.totalorder %s339, %s353
      %p355 = scmp.eq.s32.totalorder %s51, 0
      %p356 = por %p354, %p355
      %s358 = sadd.s32 %s357, 1
      %p361 = scmp.eq.s32.totalorder %s45, 1
      %p362 = scmp.ne.s32.totalorder %s357, %s359
      %p363 = scmp.eq.s32.totalorder %s45, 0
      %p364 = por %p362, %p363
      %p365 = scmp.ne.s32.totalorder %s357, %s359
      %p366 = scmp.eq.s32.totalorder %s50, 1
      %p367 = por %p365, %p366
      %p368 = scmp.ne.s32.totalorder %s359, %s360
      %p369 = scmp.eq.s32.totalorder %s50, 0
      %p370 = por %p368, %p369
      %p371 = scmp.ne.s32.totalorder %s359, %s360
      %p372 = scmp.eq.s32.totalorder %s51, 1
      %p373 = por %p371, %p372
      %p375 = scmp.ne.s32.totalorder %s360, %s374
      %p376 = scmp.eq.s32.totalorder %s51, 0
      %p377 = por %p375, %p376
      %s379 = sadd.s32 %s378, 1
      %p382 = scmp.eq.s32.totalorder %s45, 1
      %p383 = scmp.ne.s32.totalorder %s378, %s380
      %p384 = scmp.eq.s32.totalorder %s45, 0
      %p385 = por %p383, %p384
      %p386 = scmp.ne.s32.totalorder %s378, %s380
      %p387 = scmp.eq.s32.totalorder %s50, 1
      %p388 = por %p386, %p387
      %p389 = scmp.ne.s32.totalorder %s380, %s381
      %p390 = scmp.eq.s32.totalorder %s50, 0
      %p391 = por %p389, %p390
      %p392 = scmp.ne.s32.totalorder %s380, %s381
      %p393 = scmp.eq.s32.totalorder %s51, 1
      %p394 = por %p392, %p393
      %p396 = scmp.ne.s32.totalorder %s381, %s395
      %p397 = scmp.eq.s32.totalorder %s51, 0
      %p398 = por %p396, %p397
      %s400 = sadd.s32 %s399, 1
      %p403 = scmp.eq.s32.totalorder %s45, 1
      %p404 = scmp.ne.s32.totalorder %s399, %s401
      %p405 = scmp.eq.s32.totalorder %s45, 0
      %p406 = por %p404, %p405
      %p407 = scmp.ne.s32.totalorder %s399, %s401
      %p408 = scmp.eq.s32.totalorder %s50, 1
      %p409 = por %p407, %p408
      %p410 = scmp.ne.s32.totalorder %s401, %s402
      %p411 = scmp.eq.s32.totalorder %s50, 0
      %p412 = por %p410, %p411
      %p413 = scmp.ne.s32.totalorder %s401, %s402
      %p414 = scmp.eq.s32.totalorder %s51, 1
      %p415 = por %p413, %p414
      %p417 = scmp.ne.s32.totalorder %s402, %s416
      %p418 = scmp.eq.s32.totalorder %s51, 0
      %p419 = por %p417, %p418
      %s420 = ssub.s32 %s45, %s52
      %p421 = scmp.eq.s32.totalorder %s420, 0
      %s423 = sadd.s32 %s422, 1
      %s424 = scalar_select %p421, %s422, %s423
      %p427 = pneg %p421
      %p428 = scmp.eq.s32.totalorder %s45, 1
      %p429 = por %p427, %p428
      %p430 = scmp.ne.s32.totalorder %s422, %s425
      %p431 = scmp.eq.s32.totalorder %s45, 0
      %p432 = por %p430, %p431
      %p433 = scmp.ne.s32.totalorder %s422, %s425
      %p434 = scmp.eq.s32.totalorder %s50, 1
      %p435 = por %p433, %p434
      %p436 = scmp.ne.s32.totalorder %s425, %s426
      %p437 = scmp.eq.s32.totalorder %s50, 0
      %p438 = por %p436, %p437
      %p439 = scmp.ne.s32.totalorder %s425, %s426
      %p440 = scmp.eq.s32.totalorder %s51, 1
      %p441 = por %p439, %p440
      %p443 = scmp.ne.s32.totalorder %s426, %s442
      %p444 = scmp.eq.s32.totalorder %s51, 0
      %p445 = por %p443, %p444
      %p446 = scmp.le.s32.totalorder 1, %s45
      %p447 = scmp.lt.s32.totalorder %s45, 3
      %p448 = pnand %p446, %p447
      %p449 = pneg %p448
      // Predicated region
      $region9: #{tpu_custom_call.1} parent=5 // pred_check
        _
      $region10: #{tpu_custom_call.1} parent=5 // pred_check_branch
        %451 = sbr.rel (%p448) target = $region12
      $region11: #{tpu_custom_call.1} parent=5 // pred_region
        %s452 = ssub.s32 %s45, 1
        // Predicated region
        $region13: #{tpu_custom_call.1} parent=11 // pred_check
          %p453 = pneg %p66
        $region14: #{tpu_custom_call.1} parent=11 // pred_check_branch
          %455 = sbr.rel (%p453) target = $region16
        $region15: #{tpu_custom_call.1} parent=11 // pred_region
          %457 = vsyncadd [#allocation7], 0
          %s458 = sshll.u32 %s1, 4
          %s459 = int_to_ptr.hbm [resolvable:$true] %s458
          %s460 = sshll.u32 [#allocation6], 4
          %s461 = int_to_ptr.vmem [resolvable:$true] %s460
          %466 = dma.hbm_to_vmem [thread:$0]  %s459, 1024, %s461, [#allocation7], 128, 128, 8
        $region16: #{tpu_custom_call.1} parent=11 // pred_fallthru
          _
        // Predicated region
        $region17: #{tpu_custom_call.1} parent=11 // pred_check
          %p467 = pneg %p139
        $region18: #{tpu_custom_call.1} parent=11 // pred_check_branch
          %469 = sbr.rel (%p467) target = $region20
        $region19: #{tpu_custom_call.1} parent=11 // pred_region
          %471 = vsyncadd [#allocation13], 0
          %s472 = sshll.u32 %s4, 4
          %s473 = int_to_ptr.hbm [resolvable:$true] %s472
          %s474 = sshll.u32 [#allocation12], 4
          %s475 = int_to_ptr.vmem [resolvable:$true] %s474
          %480 = dma.hbm_to_vmem [thread:$0]  %s473, 1024, %s475, [#allocation13], 128, 128, 8
        $region20: #{tpu_custom_call.1} parent=11 // pred_fallthru
          _
        // Predicated region
        $region21: #{tpu_custom_call.1} parent=11 // pred_check
          %p481 = pneg %p160
        $region22: #{tpu_custom_call.1} parent=11 // pred_check_branch
          %483 = sbr.rel (%p481) target = $region24
        $region23: #{tpu_custom_call.1} parent=11 // pred_region
          %485 = vsyncadd [#allocation13], 0
          %s487 = sshll.u32 %s5, 4
          %s488 = int_to_ptr.hbm [resolvable:$true] %s487
          %s489 = sshll.u32 [#allocation14], 4
          %s490 = int_to_ptr.vmem [resolvable:$true] %s489
          %492 = dma.hbm_to_vmem [thread:$0]  %s488, 16, %s490, [#allocation13]
        $region24: #{tpu_custom_call.1} parent=11 // pred_fallthru
          _
        // Predicated region
        $region25: #{tpu_custom_call.1} parent=11 // pred_check
          %p493 = pneg %p181
        $region26: #{tpu_custom_call.1} parent=11 // pred_check_branch
          %495 = sbr.rel (%p493) target = $region28
        $region27: #{tpu_custom_call.1} parent=11 // pred_region
          %497 = vsyncadd [#allocation16], 0
          %s499 = sshll.u32 %s6, 4
          %s500 = int_to_ptr.hbm [resolvable:$true] %s499
          %s501 = sshll.u32 [#allocation15], 4
          %s502 = int_to_ptr.vmem [resolvable:$true] %s501
          %504 = dma.hbm_to_vmem [thread:$0]  %s500, 16, %s502, [#allocation16]
        $region28: #{tpu_custom_call.1} parent=11 // pred_fallthru
          _
        // Predicated region
        $region29: #{tpu_custom_call.1} parent=11 // pred_check
          %p505 = pneg %p202
        $region30: #{tpu_custom_call.1} parent=11 // pred_check_branch
          %507 = sbr.rel (%p505) target = $region32
        $region31: #{tpu_custom_call.1} parent=11 // pred_region
          %509 = vsyncadd [#allocation16], 0
          %s511 = sshll.u32 %s7, 4
          %s512 = int_to_ptr.hbm [resolvable:$true] %s511
          %s513 = sshll.u32 [#allocation17], 4
          %s514 = int_to_ptr.vmem [resolvable:$true] %s513
          %516 = dma.hbm_to_vmem [thread:$0]  %s512, 16, %s514, [#allocation16]
        $region32: #{tpu_custom_call.1} parent=11 // pred_fallthru
          _
        // Predicated region
        $region33: #{tpu_custom_call.1} parent=11 // pred_check
          %p517 = pneg %p223
        $region34: #{tpu_custom_call.1} parent=11 // pred_check_branch
          %519 = sbr.rel (%p517) target = $region36
        $region35: #{tpu_custom_call.1} parent=11 // pred_region
          _
        $region36: #{tpu_custom_call.1} parent=11 // pred_fallthru
          _
        // Predicated region
        $region37: #{tpu_custom_call.1} parent=11 // pred_check
          %p520 = pneg %p244
        $region38: #{tpu_custom_call.1} parent=11 // pred_check_branch
          %522 = sbr.rel (%p520) target = $region40
        $region39: #{tpu_custom_call.1} parent=11 // pred_region
          %524 = vsyncadd [#allocation19], 0
          %s525 = sshll.u32 %s9, 4
          %s526 = int_to_ptr.hbm [resolvable:$true] %s525
          %s527 = sshll.u32 [#allocation18], 4
          %s528 = int_to_ptr.vmem [resolvable:$true] %s527
          %533 = dma.hbm_to_vmem [thread:$0]  %s526, 3072, %s528, [#allocation19], 192, 192, 12
        $region40: #{tpu_custom_call.1} parent=11 // pred_fallthru
          _
        // Predicated region
        $region41: #{tpu_custom_call.1} parent=11 // pred_check
          %p534 = pneg %p265
        $region42: #{tpu_custom_call.1} parent=11 // pred_check_branch
          %536 = sbr.rel (%p534) target = $region44
        $region43: #{tpu_custom_call.1} parent=11 // pred_region
          _
        $region44: #{tpu_custom_call.1} parent=11 // pred_fallthru
          _
        // Predicated region
        $region45: #{tpu_custom_call.1} parent=11 // pred_check
          %p537 = pneg %p286
        $region46: #{tpu_custom_call.1} parent=11 // pred_check_branch
          %539 = sbr.rel (%p537) target = $region48
        $region47: #{tpu_custom_call.1} parent=11 // pred_region
          %541 = vsyncadd [#allocation19], 0
          %s542 = sshll.u32 %s11, 4
          %s543 = int_to_ptr.hbm [resolvable:$true] %s542
          %s544 = sshll.u32 [#allocation20], 4
          %s545 = int_to_ptr.vmem [resolvable:$true] %s544
          %550 = dma.hbm_to_vmem [thread:$0]  %s543, 1024, %s545, [#allocation19], 64, 64, 4
        $region48: #{tpu_custom_call.1} parent=11 // pred_fallthru
          _
        // Predicated region
        $region49: #{tpu_custom_call.1} parent=11 // pred_check
          %p551 = pneg %p307
        $region50: #{tpu_custom_call.1} parent=11 // pred_check_branch
          %553 = sbr.rel (%p551) target = $region52
        $region51: #{tpu_custom_call.1} parent=11 // pred_region
          _
        $region52: #{tpu_custom_call.1} parent=11 // pred_fallthru
          _
        // Predicated region
        $region53: #{tpu_custom_call.1} parent=11 // pred_check
          %p554 = pneg %p328
        $region54: #{tpu_custom_call.1} parent=11 // pred_check_branch
          %556 = sbr.rel (%p554) target = $region56
        $region55: #{tpu_custom_call.1} parent=11 // pred_region
          _
        $region56: #{tpu_custom_call.1} parent=11 // pred_fallthru
          _
        // Predicated region
        $region57: #{tpu_custom_call.1} parent=11 // pred_check
          %p557 = pneg %p349
        $region58: #{tpu_custom_call.1} parent=11 // pred_check_branch
          %559 = sbr.rel (%p557) target = $region60
        $region59: #{tpu_custom_call.1} parent=11 // pred_region
          %561 = vsyncadd [#allocation22], 0
          %s562 = sshll.u32 %s14, 4
          %s563 = int_to_ptr.hbm [resolvable:$true] %s562
          %s564 = sshll.u32 [#allocation21], 4
          %s565 = int_to_ptr.vmem [resolvable:$true] %s564
          %570 = dma.hbm_to_vmem [thread:$0]  %s563, 2048, %s565, [#allocation22], 128, 128, 8
        $region60: #{tpu_custom_call.1} parent=11 // pred_fallthru
          _
        // Predicated region
        $region61: #{tpu_custom_call.1} parent=11 // pred_check
          %p571 = pneg %p370
        $region62: #{tpu_custom_call.1} parent=11 // pred_check_branch
          %573 = sbr.rel (%p571) target = $region64
        $region63: #{tpu_custom_call.1} parent=11 // pred_region
          _
        $region64: #{tpu_custom_call.1} parent=11 // pred_fallthru
          _
        // Predicated region
        $region65: #{tpu_custom_call.1} parent=11 // pred_check
          %p574 = pneg %p391
        $region66: #{tpu_custom_call.1} parent=11 // pred_check_branch
          %576 = sbr.rel (%p574) target = $region68
        $region67: #{tpu_custom_call.1} parent=11 // pred_region
          %578 = vsyncadd [#allocation22], 0
          %s579 = sshll.u32 %s16, 4
          %s580 = int_to_ptr.hbm [resolvable:$true] %s579
          %s581 = sshll.u32 [#allocation23], 4
          %s582 = int_to_ptr.vmem [resolvable:$true] %s581
          %587 = dma.hbm_to_vmem [thread:$0]  %s580, 2048, %s582, [#allocation22], 64, 64, 4
        $region68: #{tpu_custom_call.1} parent=11 // pred_fallthru
          _
        // Predicated region
        $region69: #{tpu_custom_call.1} parent=11 // pred_check
          %p588 = pneg %p412
        $region70: #{tpu_custom_call.1} parent=11 // pred_check_branch
          %590 = sbr.rel (%p588) target = $region72
        $region71: #{tpu_custom_call.1} parent=11 // pred_region
          _
        $region72: #{tpu_custom_call.1} parent=11 // pred_fallthru
          _
      $region12: #{tpu_custom_call.1} parent=5 // pred_fallthru
        _
      %p591 = scmp.lt.s32.totalorder %s45, 2
      // Predicated region
      $region73: #{tpu_custom_call.1} parent=5 // pred_check
        %p592 = pneg %p591
      $region74: #{tpu_custom_call.1} parent=5 // pred_check_branch
        %594 = sbr.rel (%p592) target = $region76
      $region75: #{tpu_custom_call.1} parent=5 // pred_region
        // Predicated region
        $region77: #{tpu_custom_call.1} parent=75 // pred_check
          %p595 = pneg %p86
        $region78: #{tpu_custom_call.1} parent=75 // pred_check_branch
          %597 = sbr.rel (%p595) target = $region80
        $region79: #{tpu_custom_call.1} parent=75 // pred_region
          %s598 = sand.u32 %s45, 1
          %s599 = scalar_lea.sflag [#allocation10], %s598
          %s600 = sand.u32 %s76, 1
          %s601 = scalar_lea.vmem [#allocation9], %s600
          %603 = vsyncadd %s599, 0
          %s604 = scalar_lea.hbm %s2, %s45
          %s606 = sshll.u32 %s604, 4
          %s607 = int_to_ptr.hbm [resolvable:$true] %s606
          %s608 = sshll.u32 %s601, 4
          %s609 = int_to_ptr.vmem [resolvable:$true] %s608
          %611 = dma.hbm_to_vmem [thread:$0]  %s607, 16, %s609, %s599
        $region80: #{tpu_custom_call.1} parent=75 // pred_fallthru
          _
        // Predicated region
        $region81: #{tpu_custom_call.1} parent=75 // pred_check
          %p612 = pneg %p112
        $region82: #{tpu_custom_call.1} parent=75 // pred_check_branch
          %614 = sbr.rel (%p612) target = $region84
        $region83: #{tpu_custom_call.1} parent=75 // pred_region
          %s615 = sand.u32 %s45, 1
          %s616 = scalar_lea.sflag [#allocation10], %s615
          %s617 = sand.u32 %s102, 1
          %s618 = scalar_lea.vmem [#allocation11], %s617
          %620 = vsyncadd %s616, 0
          %s621 = scalar_lea.hbm %s3, %s45
          %s623 = sshll.u32 %s621, 4
          %s624 = int_to_ptr.hbm [resolvable:$true] %s623
          %s625 = sshll.u32 %s618, 4
          %s626 = int_to_ptr.vmem [resolvable:$true] %s625
          %628 = dma.hbm_to_vmem [thread:$0]  %s624, 16, %s626, %s616
        $region84: #{tpu_custom_call.1} parent=75 // pred_fallthru
          _
      $region76: #{tpu_custom_call.1} parent=5 // pred_fallthru
        _
      %p629 = scmp.le.s32.totalorder 1, %s45
      %p630 = scmp.lt.s32.totalorder %s45, 3
      %p631 = pnand %p629, %p630
      %p632 = pneg %p631
      // Predicated region
      $region85: #{tpu_custom_call.1} parent=5 // pred_check
        _
      $region86: #{tpu_custom_call.1} parent=5 // pred_check_branch
        %634 = sbr.rel (%p631) target = $region88
      $region87: #{tpu_custom_call.1} parent=5 // pred_region
        %s635 = ssub.s32 %s45, 1
        // Predicated region
        $region89: #{tpu_custom_call.1} parent=87 // pred_check
          %p636 = pneg %p66
        $region90: #{tpu_custom_call.1} parent=87 // pred_check_branch
          %638 = sbr.rel (%p636) target = $region92
        $region91: #{tpu_custom_call.1} parent=87 // pred_region
          %640 = dma.done [#allocation7], 1024
        $region92: #{tpu_custom_call.1} parent=87 // pred_fallthru
          _
        %s641 = sand.u32 %s50, 1
        %s642 = scalar_lea.sflag [#allocation10], %s641
        %s643 = sand.u32 %s79, 1
        %s644 = scalar_lea.vmem [#allocation9], %s643
        // Predicated region
        $region93: #{tpu_custom_call.1} parent=87 // pred_check
          %p645 = pneg %p92
        $region94: #{tpu_custom_call.1} parent=87 // pred_check_branch
          %647 = sbr.rel (%p645) target = $region96
        $region95: #{tpu_custom_call.1} parent=87 // pred_region
          %649 = dma.done %s642, 16
        $region96: #{tpu_custom_call.1} parent=87 // pred_fallthru
          _
        %s650 = sand.u32 %s50, 1
        %s651 = scalar_lea.sflag [#allocation10], %s650
        %s652 = sand.u32 %s105, 1
        %s653 = scalar_lea.vmem [#allocation11], %s652
        // Predicated region
        $region97: #{tpu_custom_call.1} parent=87 // pred_check
          %p654 = pneg %p118
        $region98: #{tpu_custom_call.1} parent=87 // pred_check_branch
          %656 = sbr.rel (%p654) target = $region100
        $region99: #{tpu_custom_call.1} parent=87 // pred_region
          %658 = dma.done %s651, 16
        $region100: #{tpu_custom_call.1} parent=87 // pred_fallthru
          _
        // Predicated region
        $region101: #{tpu_custom_call.1} parent=87 // pred_check
          %p659 = pneg %p139
        $region102: #{tpu_custom_call.1} parent=87 // pred_check_branch
          %661 = sbr.rel (%p659) target = $region104
        $region103: #{tpu_custom_call.1} parent=87 // pred_region
          %663 = dma.done [#allocation13], 1024
        $region104: #{tpu_custom_call.1} parent=87 // pred_fallthru
          _
        // Predicated region
        $region105: #{tpu_custom_call.1} parent=87 // pred_check
          %p664 = pneg %p160
        $region106: #{tpu_custom_call.1} parent=87 // pred_check_branch
          %666 = sbr.rel (%p664) target = $region108
        $region107: #{tpu_custom_call.1} parent=87 // pred_region
          %668 = dma.done [#allocation13], 16
        $region108: #{tpu_custom_call.1} parent=87 // pred_fallthru
          _
        // Predicated region
        $region109: #{tpu_custom_call.1} parent=87 // pred_check
          %p669 = pneg %p181
        $region110: #{tpu_custom_call.1} parent=87 // pred_check_branch
          %671 = sbr.rel (%p669) target = $region112
        $region111: #{tpu_custom_call.1} parent=87 // pred_region
          %673 = dma.done [#allocation16], 16
        $region112: #{tpu_custom_call.1} parent=87 // pred_fallthru
          _
        // Predicated region
        $region113: #{tpu_custom_call.1} parent=87 // pred_check
          %p674 = pneg %p202
        $region114: #{tpu_custom_call.1} parent=87 // pred_check_branch
          %676 = sbr.rel (%p674) target = $region116
        $region115: #{tpu_custom_call.1} parent=87 // pred_region
          %678 = dma.done [#allocation16], 16
        $region116: #{tpu_custom_call.1} parent=87 // pred_fallthru
          _
        // Predicated region
        $region117: #{tpu_custom_call.1} parent=87 // pred_check
          %p679 = pneg %p244
        $region118: #{tpu_custom_call.1} parent=87 // pred_check_branch
          %681 = sbr.rel (%p679) target = $region120
        $region119: #{tpu_custom_call.1} parent=87 // pred_region
          %683 = dma.done [#allocation19], 3072
        $region120: #{tpu_custom_call.1} parent=87 // pred_fallthru
          _
        // Predicated region
        $region121: #{tpu_custom_call.1} parent=87 // pred_check
          %p684 = pneg %p286
        $region122: #{tpu_custom_call.1} parent=87 // pred_check_branch
          %686 = sbr.rel (%p684) target = $region124
        $region123: #{tpu_custom_call.1} parent=87 // pred_region
          %688 = dma.done [#allocation19], 1024
        $region124: #{tpu_custom_call.1} parent=87 // pred_fallthru
          _
        // Predicated region
        $region125: #{tpu_custom_call.1} parent=87 // pred_check
          %p689 = pneg %p349
        $region126: #{tpu_custom_call.1} parent=87 // pred_check_branch
          %691 = sbr.rel (%p689) target = $region128
        $region127: #{tpu_custom_call.1} parent=87 // pred_region
          %693 = dma.done [#allocation22], 2048
        $region128: #{tpu_custom_call.1} parent=87 // pred_fallthru
          _
        // Predicated region
        $region129: #{tpu_custom_call.1} parent=87 // pred_check
          %p694 = pneg %p391
        $region130: #{tpu_custom_call.1} parent=87 // pred_check_branch
          %696 = sbr.rel (%p694) target = $region132
        $region131: #{tpu_custom_call.1} parent=87 // pred_region
          %698 = dma.done [#allocation22], 2048
        $region132: #{tpu_custom_call.1} parent=87 // pred_fallthru
          _
        %p699 = pneg %p66
        %p700 = pneg %p63
        %s701 = sand.u32 %s50, 1
        %s702 = scalar_lea.sflag [#allocation10], %s701
        %s703 = sand.u32 %s79, 1
        %s704 = scalar_lea.vmem [#allocation9], %s703
        %p705 = pneg %p92
        %p706 = pneg %p89
        %s707 = sand.u32 %s50, 1
        %s708 = scalar_lea.sflag [#allocation10], %s707
        %s709 = sand.u32 %s105, 1
        %s710 = scalar_lea.vmem [#allocation11], %s709
        %p711 = pneg %p118
        %p712 = pneg %p115
        %p713 = pneg %p139
        %p714 = pneg %p136
        %p715 = pneg %p160
        %p716 = pneg %p157
        %p717 = pneg %p181
        %p718 = pneg %p178
        %p719 = pneg %p202
        %p720 = pneg %p199
        %p721 = pneg %p223
        %p722 = pneg %p220
        %p723 = pneg %p244
        %p724 = pneg %p241
        %p725 = pneg %p265
        %p726 = pneg %p262
        %p727 = pneg %p286
        %p728 = pneg %p283
        %p729 = pneg %p307
        %p730 = pneg %p304
        %p731 = pneg %p328
        %p732 = pneg %p325
        %p733 = pneg %p349
        %p734 = pneg %p346
        %p735 = pneg %p370
        %p736 = pneg %p367
        %p737 = pneg %p391
        %p738 = pneg %p388
        %p739 = pneg %p412
        %p740 = pneg %p409
        %p741 = pneg %p438
        %p742 = pneg %p435
        %s743 = sand.u32 %s425, 1
        %s744 = scalar_lea.sflag [#allocation8], %s743
        %s745 = sand.u32 %s425, 1
        %s746 = smul.addr %s745, 8
        %s747 = scalar_lea.vmem [#allocation24], %s746
        %s749 = smul.u32 %s50, 128
        %s750 = sld [smem:[#allocation4 + %s749]]
        %s751 = scalar_lea.vmem [#allocation6], %s750
        %v752 = vld [vmem:[%s751] sm:$0x1]
        %753 = vst [vmem:[#allocation2] sm:$0x1] %v752
        %s754 = sadd.s32 %s749, 1
        %s755 = sld [smem:[#allocation4 + %s754]]
        %s756 = scalar_lea.vmem [#allocation6], %s755
        %v757 = vld [vmem:[%s756] sm:$0x1]
        %758 = vst [vmem:[#allocation2 + $0x1] sm:$0x1] %v757
        %s759 = sadd.s32 %s749, 2
        %s760 = sld [smem:[#allocation4 + %s759]]
        %s761 = scalar_lea.vmem [#allocation6], %s760
        %v762 = vld [vmem:[%s761] sm:$0x1]
        %763 = vst [vmem:[#allocation2 + $0x2] sm:$0x1] %v762
        %s764 = sadd.s32 %s749, 3
        %s765 = sld [smem:[#allocation4 + %s764]]
        %s766 = scalar_lea.vmem [#allocation6], %s765
        %v767 = vld [vmem:[%s766] sm:$0x1]
        %768 = vst [vmem:[#allocation2 + $0x3] sm:$0x1] %v767
        %s769 = sadd.s32 %s749, 4
        %s770 = sld [smem:[#allocation4 + %s769]]
        %s771 = scalar_lea.vmem [#allocation6], %s770
        %v772 = vld [vmem:[%s771] sm:$0x1]
        %773 = vst [vmem:[#allocation2 + $0x4] sm:$0x1] %v772
        %s774 = sadd.s32 %s749, 5
        %s775 = sld [smem:[#allocation4 + %s774]]
        %s776 = scalar_lea.vmem [#allocation6], %s775
        %v777 = vld [vmem:[%s776] sm:$0x1]
        %778 = vst [vmem:[#allocation2 + $0x5] sm:$0x1] %v777
        %s779 = sadd.s32 %s749, 6
        %s780 = sld [smem:[#allocation4 + %s779]]
        %s781 = scalar_lea.vmem [#allocation6], %s780
        %v782 = vld [vmem:[%s781] sm:$0x1]
        %783 = vst [vmem:[#allocation2 + $0x6] sm:$0x1] %v782
        %s784 = sadd.s32 %s749, 7
        %s785 = sld [smem:[#allocation4 + %s784]]
        %s786 = scalar_lea.vmem [#allocation6], %s785
        %v787 = vld [vmem:[%s786] sm:$0x1]
        %788 = vst [vmem:[#allocation2 + $0x7] sm:$0x1] %v787
        %v789 = vld [vmem:[#allocation2] sm:$0xff]
        %v790 = vld [vmem:[%s644] sm:$0x1]
        %v791 = vld [vmem:[#allocation12] sm:$0xff]
        %v792 = vld [vmem:[#allocation12 + $0x8] sm:$0xff]
        %v793 = vld [vmem:[#allocation12 + $0x10] sm:$0xff]
        %v794 = vld [vmem:[#allocation12 + $0x18] sm:$0xff]
        %v795 = vld [vmem:[#allocation12 + $0x20] sm:$0xff]
        %v796 = vld [vmem:[#allocation12 + $0x28] sm:$0xff]
        %v797 = vld [vmem:[#allocation12 + $0x30] sm:$0xff]
        %v798 = vld [vmem:[#allocation12 + $0x38] sm:$0xff]
        %v799 = vld [vmem:[#allocation14] sm:$0x1]
        %vm800 = vcmask 523264
        %v802 = vsel %vm800, %v790, 0
        %804 = vmatpush.msra.mxu0 0.0
        %805 = vmatpush.msra.mxu0 0.0
        %806 = vmatpush.msra.mxu0 0.0
        %807 = vmatpush.msra.mxu0 0.0
        %808 = vmatpush.msra.mxu0 0.0
        %809 = vmatpush.msra.mxu0 0.0
        %810 = vmatpush.msra.mxu0 0.0
        %811 = vmatpush.msra.mxu0 0.0
        %812 = vmatpush.msra.mxu0 %v798
        %813 = vmatpush.msra.mxu0 %v797
        %814 = vmatpush.msra.mxu0 %v796
        %815 = vmatpush.msra.mxu0 %v795
        %816 = vmatpush.msra.mxu0 %v794
        %817 = vmatpush.msra.mxu0 %v793
        %818 = vmatpush.msra.mxu0 %v792
        %819 = vmatpush.msra.mxu0 %v791
        %820 = vmatmul.f32.gmra.mxu0 %v802
        %v821 = vpop.f32.mrf.mxu0
        %v822 = vadd.f32 %v799, %v821
        %823 = vdwg.mxu0
        %v824 = vperm.slane %v822, 0
        %v825 = vld [vmem:[#allocation15] sm:$0x1]
        %v827 = vperm.slane %v825, 0
        %v829 = vmul.f32 %v789, %v827
        %830 = vadd.xlane.f32.xlu0 %v829
        %v831 = vpop.xlane.xlu0 %830
        %v832 = vld [vmem:[#allocation17] sm:$0x1]
        %v833 = vmul.f32 %v822, %v832
        %vm834 = vcmask 1040384
        %v835 = vsel %vm834, %v833, 0.0
        %836 = vadd.xlane.f32.xlu0 %v835
        %v837 = vpop.xlane.xlu0 %836
        %v838 = vperm.slane %v837, 0
        %v839 = vadd.f32 %v831, %v838
        %v840 = vld [vmem:[#allocation5] sm:$0x1]
        %v842 = vperm.slane %v840, 0
        %v844 = vadd.f32 %v839, %v842
        %v845 = vxor.u32 %v844, 2147483648
        %v846 = vmul.f32 %v845, 1.442695
        %v847 = vpow.pop %v846
        %v848 = vadd.f32 %v847, 1.0
        %v849 = vrcp.pop %v848
        %v850 = vmul.f32 %v848, %v849
        %v851 = vsub.f32 1.0, %v850
        %v852 = vmul.f32 %v849, %v851
        %v853 = vadd.f32 %v849, %v852
        %vm854 = vweird.f32 %v848
        %vm855 = vweird.f32 %v849
        %vm856 = vmor %vm854, %vm855
        %v857 = vsel %vm856, %v849, %v853
        %v858 = vand.u32 2147483647, %v848
        %vm859 = vcmp.eq.f32.partialorder %v858, 8.507059e+37
        %v860 = vand.u32 %v848, 2147483648
        %v861 = vor.u32 1.1754944e-38, %v860
        %v862 = vsel %vm859, %v861, %v857
        %v863 = vmul.f32 1.0, %v862
        %v864 = vsub.f32 1.0, %v863
        %866 = vset.pattern.permute.xlu0 0
        %867 = vperm.xlu0 %866, %v864
        %v868 = vpop.permute.xlu0 %867
        %v870 = vmul.f32 %v789, %v868
        %872 = vset.pattern.permute.xlu0 0
        %873 = vperm.xlu0 %872, %v863
        %v874 = vpop.permute.xlu0 %873
        %v876 = vmul.f32 %v824, %v874
        %v877 = vadd.f32 %v870, %v876
        %v878 = vpack.c.bf16 %v877, %v877
        %v879 = vld [vmem:[#allocation18] sm:$0xff]
        %v880 = vld [vmem:[#allocation18 + $0x8] sm:$0xf]
        %v881 = vld [vmem:[#allocation18 + $0xc] sm:$0xff]
        %v882 = vld [vmem:[#allocation18 + $0x14] sm:$0xf]
        %v883 = vld [vmem:[#allocation18 + $0x18] sm:$0xff]
        %v884 = vld [vmem:[#allocation18 + $0x20] sm:$0xf]
        %v885 = vld [vmem:[#allocation18 + $0x24] sm:$0xff]
        %v886 = vld [vmem:[#allocation18 + $0x2c] sm:$0xf]
        %v887 = vld [vmem:[#allocation18 + $0x30] sm:$0xff]
        %v888 = vld [vmem:[#allocation18 + $0x38] sm:$0xf]
        %v889 = vld [vmem:[#allocation18 + $0x3c] sm:$0xff]
        %v890 = vld [vmem:[#allocation18 + $0x44] sm:$0xf]
        %v891 = vld [vmem:[#allocation18 + $0x48] sm:$0xff]
        %v892 = vld [vmem:[#allocation18 + $0x50] sm:$0xf]
        %v893 = vld [vmem:[#allocation18 + $0x54] sm:$0xff]
        %v894 = vld [vmem:[#allocation18 + $0x5c] sm:$0xf]
        %v895 = vld [vmem:[#allocation18 + $0x60] sm:$0xff]
        %v896 = vld [vmem:[#allocation18 + $0x68] sm:$0xf]
        %v897 = vld [vmem:[#allocation18 + $0x6c] sm:$0xff]
        %v898 = vld [vmem:[#allocation18 + $0x74] sm:$0xf]
        %v899 = vld [vmem:[#allocation18 + $0x78] sm:$0xff]
        %v900 = vld [vmem:[#allocation18 + $0x80] sm:$0xf]
        %v901 = vld [vmem:[#allocation18 + $0x84] sm:$0xff]
        %v902 = vld [vmem:[#allocation18 + $0x8c] sm:$0xf]
        %v903 = vld [vmem:[#allocation18 + $0x90] sm:$0xff]
        %v904 = vld [vmem:[#allocation18 + $0x98] sm:$0xf]
        %v905 = vld [vmem:[#allocation18 + $0x9c] sm:$0xff]
        %v906 = vld [vmem:[#allocation18 + $0xa4] sm:$0xf]
        %v907 = vld [vmem:[#allocation18 + $0xa8] sm:$0xff]
        %v908 = vld [vmem:[#allocation18 + $0xb0] sm:$0xf]
        %v909 = vld [vmem:[#allocation18 + $0xb4] sm:$0xff]
        %v910 = vld [vmem:[#allocation18 + $0xbc] sm:$0xf]
        %v911 = vld [vmem:[%s10] sm:$0x7]
        %v913 = vperm.slane %v911, 0
        %v914 = vperm.slane %v911, 1
        %v915 = vperm.slane %v911, 2
        %v951 = vunpack.c.l.b16 %v879
        %v952 = vunpack.c.h.b16 %v879
        %v953 = vunpack.c.l.b16 %v880
        %v954 = vunpack.c.l.b16 %v881
        %v955 = vunpack.c.h.b16 %v881
        %v956 = vunpack.c.l.b16 %v882
        %v957 = vunpack.c.l.b16 %v883
        %v958 = vunpack.c.h.b16 %v883
        %v959 = vunpack.c.l.b16 %v884
        %v960 = vunpack.c.l.b16 %v885
        %v961 = vunpack.c.h.b16 %v885
        %v962 = vunpack.c.l.b16 %v886
        %v963 = vunpack.c.l.b16 %v887
        %v964 = vunpack.c.h.b16 %v887
        %v965 = vunpack.c.l.b16 %v888
        %v966 = vunpack.c.l.b16 %v889
        %v967 = vunpack.c.h.b16 %v889
        %v968 = vunpack.c.l.b16 %v890
        %v969 = vunpack.c.l.b16 %v891
        %v970 = vunpack.c.h.b16 %v891
        %v971 = vunpack.c.l.b16 %v892
        %v972 = vunpack.c.l.b16 %v893
        %v973 = vunpack.c.h.b16 %v893
        %v974 = vunpack.c.l.b16 %v894
        %v975 = vunpack.c.l.b16 %v895
        %v976 = vunpack.c.h.b16 %v895
        %v977 = vunpack.c.l.b16 %v896
        %v978 = vunpack.c.l.b16 %v897
        %v979 = vunpack.c.h.b16 %v897
        %v980 = vunpack.c.l.b16 %v898
        %v981 = vunpack.c.l.b16 %v899
        %v982 = vunpack.c.h.b16 %v899
        %v983 = vunpack.c.l.b16 %v900
        %v984 = vunpack.c.l.b16 %v901
        %v985 = vunpack.c.h.b16 %v901
        %v986 = vunpack.c.l.b16 %v902
        %v987 = vunpack.c.l.b16 %v903
        %v988 = vunpack.c.h.b16 %v903
        %v989 = vunpack.c.l.b16 %v904
        %v990 = vunpack.c.l.b16 %v905
        %v991 = vunpack.c.h.b16 %v905
        %v992 = vunpack.c.l.b16 %v906
        %v993 = vunpack.c.l.b16 %v907
        %v994 = vunpack.c.h.b16 %v907
        %v995 = vunpack.c.l.b16 %v908
        %v996 = vunpack.c.l.b16 %v909
        %v997 = vunpack.c.h.b16 %v909
        %v998 = vunpack.c.l.b16 %v910
        %v999 = vpack.c.b16 %v954, %v951
        %v1000 = vpack.c.b16 %v955, %v952
        %v1001 = vpack.c.b16 %v956, %v953
        %v1002 = vpack.c.b16 %v960, %v957
        %v1003 = vpack.c.b16 %v961, %v958
        %v1004 = vpack.c.b16 %v962, %v959
        %v1005 = vpack.c.b16 %v966, %v963
        %v1006 = vpack.c.b16 %v967, %v964
        %v1007 = vpack.c.b16 %v968, %v965
        %v1008 = vpack.c.b16 %v972, %v969
        %v1009 = vpack.c.b16 %v973, %v970
        %v1010 = vpack.c.b16 %v974, %v971
        %v1011 = vpack.c.b16 %v978, %v975
        %v1012 = vpack.c.b16 %v979, %v976
        %v1013 = vpack.c.b16 %v980, %v977
        %v1014 = vpack.c.b16 %v984, %v981
        %v1015 = vpack.c.b16 %v985, %v982
        %v1016 = vpack.c.b16 %v986, %v983
        %v1017 = vpack.c.b16 %v990, %v987
        %v1018 = vpack.c.b16 %v991, %v988
        %v1019 = vpack.c.b16 %v992, %v989
        %v1020 = vpack.c.b16 %v996, %v993
        %v1021 = vpack.c.b16 %v997, %v994
        %v1022 = vpack.c.b16 %v998, %v995
        %1047 = vmatpush.bf16.msra.mxu0 %v1020
        %1048 = vmatpush.bf16.msra.mxu0 %v1017
        %1049 = vmatpush.bf16.msra.mxu0 %v1014
        %1050 = vmatpush.bf16.msra.mxu0 %v1011
        %1051 = vmatpush.bf16.msra.mxu0 %v1008
        %1052 = vmatpush.bf16.msra.mxu0 %v1005
        %1053 = vmatpush.bf16.msra.mxu0 %v1002
        %1054 = vmatpush.bf16.msra.mxu0 %v999
        %1055 = vmatmul.bf16.gmra.mxu0 %v878
        %v1056 = vpop.f32.mrf.mxu0
        %v1057 = vadd.f32 %v913, %v1056
        %v1058 = vpop.f32.mrf.mxu0
        %1059 = vdwg.mxu0
        %1060 = vmatpush.bf16.msra.mxu0 %v1021
        %1061 = vmatpush.bf16.msra.mxu0 %v1018
        %1062 = vmatpush.bf16.msra.mxu0 %v1015
        %1063 = vmatpush.bf16.msra.mxu0 %v1012
        %1064 = vmatpush.bf16.msra.mxu0 %v1009
        %1065 = vmatpush.bf16.msra.mxu0 %v1006
        %1066 = vmatpush.bf16.msra.mxu0 %v1003
        %1067 = vmatpush.bf16.msra.mxu0 %v1000
        %1068 = vmatmul.bf16.gmra.mxu0 %v878
        %v1069 = vpop.f32.mrf.mxu0
        %v1070 = vadd.f32 %v914, %v1069
        %v1071 = vpop.f32.mrf.mxu0
        %1072 = vdwg.mxu0
        %1073 = vmatpush.bf16.msra.mxu0 %v1022
        %1074 = vmatpush.bf16.msra.mxu0 %v1019
        %1075 = vmatpush.bf16.msra.mxu0 %v1016
        %1076 = vmatpush.bf16.msra.mxu0 %v1013
        %1077 = vmatpush.bf16.msra.mxu0 %v1010
        %1078 = vmatpush.bf16.msra.mxu0 %v1007
        %1079 = vmatpush.bf16.msra.mxu0 %v1004
        %1080 = vmatpush.bf16.msra.mxu0 %v1001
        %1081 = vmatmul.bf16.gmra.mxu0 %v878
        %v1082 = vpop.f32.mrf.mxu0
        %v1083 = vadd.f32 %v915, %v1082
        %v1084 = vpop.f32.mrf.mxu0
        %1085 = vdwg.mxu0
        %v1086 = vpack.c.bf16 %v1057, %v1057
        %v1087 = vpack.c.bf16 %v1070, %v1070
        %v1088 = vld [vmem:[%s653] sm:$0x1]
        %v1090 = vperm.slane %v1088, 0
        %1092 = vmatpush.bf16.xpose.msra.mxu0 0
        %1093 = vmatpush.bf16.xpose.msra.mxu0 0
        %1094 = vmatpush.bf16.xpose.msra.mxu0 0
        %1095 = vmatpush.bf16.xpose.msra.mxu0 0
        %1096 = vmatpush.bf16.xpose.msra.mxu0 0
        %1097 = vmatpush.bf16.xpose.msra.mxu0 0
        %1098 = vmatpush.bf16.xpose.msra.mxu0 0
        %1099 = vmatpush.bf16.xpose.msra.mxu0 %v1087
        %1100 = vmatmul.bf16.gmra.mxu0 %v1086
        %v1101 = vpop.f32.mrf.mxu0
        %v1102 = vadd.f32 %v1090, %v1101
        %v1103 = vpop.f32.mrf.mxu0
        %1104 = vdwg.mxu0
        %vm1105 = vcmask 64512
        %v1106 = vsel %vm1105, %v1102, -inf
        %1107 = vmax.xlane.f32.xlu0 %v1106
        %v1108 = vpop.xlane.xlu0 %1107
        %v1109 = vsub.f32 %v1102, %v1108
        %v1110 = vmul.f32 %v1109, 1.442695
        %v1111 = vpow.pop %v1110
        %v1112 = vsel %vm1105, %v1111, 0.0
        %1113 = vadd.xlane.f32.xlu0 %v1112
        %v1114 = vpop.xlane.xlu0 %1113
        %v1115 = vrcp.pop %v1114
        %v1116 = vmul.f32 %v1111, %v1115
        %v1117 = vpack.c.bf16 %v1116, %v1116
        %v1118 = vpack.c.bf16 %v1083, %v1083
        %v1120 = vsel %vm1105, %v1117, 0
        %vm1122 = vcmask 1043456
        %v1124 = vsel %vm1122, %v1118, 0
        %1126 = vmatpush.bf16.msra.mxu0 0
        %1127 = vmatpush.bf16.msra.mxu0 0
        %1128 = vmatpush.bf16.msra.mxu0 0
        %1129 = vmatpush.bf16.msra.mxu0 0
        %1130 = vmatpush.bf16.msra.mxu0 0
        %1131 = vmatpush.bf16.msra.mxu0 0
        %1132 = vmatpush.bf16.msra.mxu0 0
        %1133 = vmatpush.bf16.msra.mxu0 %v1124
        %1134 = vmatmul.bf16.gmra.mxu0 %v1120
        %v1135 = vpop.f32.mrf.mxu0
        %v1136 = vadd.f32 0.0, %v1135
        %v1137 = vpop.f32.mrf.mxu0
        %1138 = vdwg.mxu0
        %v1139 = vpack.c.bf16 %v1136, %v1136
        %v1140 = vld [vmem:[#allocation20] sm:$0xf]
        %v1141 = vld [vmem:[#allocation20 + $0x4] sm:$0xf]
        %v1142 = vld [vmem:[#allocation20 + $0x8] sm:$0xf]
        %v1143 = vld [vmem:[#allocation20 + $0xc] sm:$0xf]
        %v1144 = vld [vmem:[#allocation20 + $0x10] sm:$0xf]
        %v1145 = vld [vmem:[#allocation20 + $0x14] sm:$0xf]
        %v1146 = vld [vmem:[#allocation20 + $0x18] sm:$0xf]
        %v1147 = vld [vmem:[#allocation20 + $0x1c] sm:$0xf]
        %v1148 = vld [vmem:[#allocation20 + $0x20] sm:$0xf]
        %v1149 = vld [vmem:[#allocation20 + $0x24] sm:$0xf]
        %v1150 = vld [vmem:[#allocation20 + $0x28] sm:$0xf]
        %v1151 = vld [vmem:[#allocation20 + $0x2c] sm:$0xf]
        %v1152 = vld [vmem:[#allocation20 + $0x30] sm:$0xf]
        %v1153 = vld [vmem:[#allocation20 + $0x34] sm:$0xf]
        %v1154 = vld [vmem:[#allocation20 + $0x38] sm:$0xf]
        %v1155 = vld [vmem:[#allocation20 + $0x3c] sm:$0xf]
        %v1156 = vld [vmem:[%s12] sm:$0x1]
        %v1158 = vperm.slane %v1156, 0
        %v1176 = vunpack.c.l.b16 %v1140
        %v1177 = vunpack.c.l.b16 %v1141
        %v1178 = vunpack.c.l.b16 %v1142
        %v1179 = vunpack.c.l.b16 %v1143
        %v1180 = vunpack.c.l.b16 %v1144
        %v1181 = vunpack.c.l.b16 %v1145
        %v1182 = vunpack.c.l.b16 %v1146
        %v1183 = vunpack.c.l.b16 %v1147
        %v1184 = vunpack.c.l.b16 %v1148
        %v1185 = vunpack.c.l.b16 %v1149
        %v1186 = vunpack.c.l.b16 %v1150
        %v1187 = vunpack.c.l.b16 %v1151
        %v1188 = vunpack.c.l.b16 %v1152
        %v1189 = vunpack.c.l.b16 %v1153
        %v1190 = vunpack.c.l.b16 %v1154
        %v1191 = vunpack.c.l.b16 %v1155
        %v1192 = vpack.c.b16 %v1177, %v1176
        %v1193 = vpack.c.b16 %v1179, %v1178
        %v1194 = vpack.c.b16 %v1181, %v1180
        %v1195 = vpack.c.b16 %v1183, %v1182
        %v1196 = vpack.c.b16 %v1185, %v1184
        %v1197 = vpack.c.b16 %v1187, %v1186
        %v1198 = vpack.c.b16 %v1189, %v1188
        %v1199 = vpack.c.b16 %v1191, %v1190
        %1208 = vmatpush.bf16.msra.mxu0 %v1199
        %1209 = vmatpush.bf16.msra.mxu0 %v1198
        %1210 = vmatpush.bf16.msra.mxu0 %v1197
        %1211 = vmatpush.bf16.msra.mxu0 %v1196
        %1212 = vmatpush.bf16.msra.mxu0 %v1195
        %1213 = vmatpush.bf16.msra.mxu0 %v1194
        %1214 = vmatpush.bf16.msra.mxu0 %v1193
        %1215 = vmatpush.bf16.msra.mxu0 %v1192
        %1216 = vmatmul.bf16.gmra.mxu0 %v1139
        %v1217 = vpop.f32.mrf.mxu0
        %v1218 = vadd.f32 %v1158, %v1217
        %v1219 = vpop.f32.mrf.mxu0
        %1220 = vdwg.mxu0
        %v1221 = vadd.f32 %v877, %v1218
        %v1222 = vld [vmem:[%s13] sm:$0x1]
        %s1223 = scalar_lea.vmem %s13, 1
        %v1224 = vld [vmem:[%s1223] sm:$0x1]
        %1225 = vadd.xlane.f32.xlu0 %v1221
        %v1226 = vpop.xlane.xlu0 %1225
        %v1227 = vrcp.pop 128.0
        %v1228 = vmul.f32 128.0, %v1227
        %v1229 = vsub.f32 1.0, %v1228
        %v1230 = vmul.f32 %v1227, %v1229
        %v1231 = vadd.f32 %v1227, %v1230
        %vm1232 = vweird.f32 %v1227
        %v1233 = vsel %vm1232, %v1227, %v1231
        %v1234 = vmul.f32 %v1226, %v1233
        %v1235 = vsub.f32 %v1221, %v1234
        %v1236 = vmul.f32 %v1235, %v1235
        %1237 = vadd.xlane.f32.xlu0 %v1236
        %v1238 = vpop.xlane.xlu0 %1237
        %v1239 = vmul.f32 %v1238, %v1233
        %v1240 = vadd.f32 %v1239, 1e-05
        %v1241 = vrsqrt.pop %v1240
        %v1242 = vmul.f32 %v1241, %v1240
        %v1243 = vmul.f32 %v1242, %v1241
        %v1244 = vmul.f32 0.5, %v1243
        %v1245 = vsub.f32 1.5, %v1244
        %v1246 = vmul.f32 %v1241, %v1245
        %vm1247 = vweird.f32 %v1240
        %vm1248 = vweird.f32 %v1241
        %vm1249 = vmor %vm1247, %vm1248
        %v1250 = vsel %vm1249, %v1241, %v1246
        %v1251 = vmul.f32 %v1235, %v1250
        %v1253 = vperm.slane %v1222, 0
        %v1255 = vmul.f32 %v1251, %v1253
        %v1257 = vperm.slane %v1224, 0
        %v1259 = vadd.f32 %v1255, %v1257
        %v1260 = vpack.c.bf16 %v1259, %v1259
        %v1261 = vld [vmem:[#allocation21] sm:$0xff]
        %v1262 = vld [vmem:[#allocation21 + $0x8] sm:$0xff]
        %v1263 = vld [vmem:[#allocation21 + $0x10] sm:$0xff]
        %v1264 = vld [vmem:[#allocation21 + $0x18] sm:$0xff]
        %v1265 = vld [vmem:[#allocation21 + $0x20] sm:$0xff]
        %v1266 = vld [vmem:[#allocation21 + $0x28] sm:$0xff]
        %v1267 = vld [vmem:[#allocation21 + $0x30] sm:$0xff]
        %v1268 = vld [vmem:[#allocation21 + $0x38] sm:$0xff]
        %v1269 = vld [vmem:[#allocation21 + $0x40] sm:$0xff]
        %v1270 = vld [vmem:[#allocation21 + $0x48] sm:$0xff]
        %v1271 = vld [vmem:[#allocation21 + $0x50] sm:$0xff]
        %v1272 = vld [vmem:[#allocation21 + $0x58] sm:$0xff]
        %v1273 = vld [vmem:[#allocation21 + $0x60] sm:$0xff]
        %v1274 = vld [vmem:[#allocation21 + $0x68] sm:$0xff]
        %v1275 = vld [vmem:[#allocation21 + $0x70] sm:$0xff]
        %v1276 = vld [vmem:[#allocation21 + $0x78] sm:$0xff]
        %v1277 = vld [vmem:[%s15] sm:$0x3]
        %v1279 = vperm.slane %v1277, 0
        %v1280 = vperm.slane %v1277, 1
        %v1299 = vunpack.c.l.b16 %v1261
        %v1300 = vunpack.c.h.b16 %v1261
        %v1301 = vunpack.c.l.b16 %v1262
        %v1302 = vunpack.c.h.b16 %v1262
        %v1303 = vunpack.c.l.b16 %v1263
        %v1304 = vunpack.c.h.b16 %v1263
        %v1305 = vunpack.c.l.b16 %v1264
        %v1306 = vunpack.c.h.b16 %v1264
        %v1307 = vunpack.c.l.b16 %v1265
        %v1308 = vunpack.c.h.b16 %v1265
        %v1309 = vunpack.c.l.b16 %v1266
        %v1310 = vunpack.c.h.b16 %v1266
        %v1311 = vunpack.c.l.b16 %v1267
        %v1312 = vunpack.c.h.b16 %v1267
        %v1313 = vunpack.c.l.b16 %v1268
        %v1314 = vunpack.c.h.b16 %v1268
        %v1315 = vunpack.c.l.b16 %v1269
        %v1316 = vunpack.c.h.b16 %v1269
        %v1317 = vunpack.c.l.b16 %v1270
        %v1318 = vunpack.c.h.b16 %v1270
        %v1319 = vunpack.c.l.b16 %v1271
        %v1320 = vunpack.c.h.b16 %v1271
        %v1321 = vunpack.c.l.b16 %v1272
        %v1322 = vunpack.c.h.b16 %v1272
        %v1323 = vunpack.c.l.b16 %v1273
        %v1324 = vunpack.c.h.b16 %v1273
        %v1325 = vunpack.c.l.b16 %v1274
        %v1326 = vunpack.c.h.b16 %v1274
        %v1327 = vunpack.c.l.b16 %v1275
        %v1328 = vunpack.c.h.b16 %v1275
        %v1329 = vunpack.c.l.b16 %v1276
        %v1330 = vunpack.c.h.b16 %v1276
        %v1331 = vpack.c.b16 %v1301, %v1299
        %v1332 = vpack.c.b16 %v1302, %v1300
        %v1333 = vpack.c.b16 %v1305, %v1303
        %v1334 = vpack.c.b16 %v1306, %v1304
        %v1335 = vpack.c.b16 %v1309, %v1307
        %v1336 = vpack.c.b16 %v1310, %v1308
        %v1337 = vpack.c.b16 %v1313, %v1311
        %v1338 = vpack.c.b16 %v1314, %v1312
        %v1339 = vpack.c.b16 %v1317, %v1315
        %v1340 = vpack.c.b16 %v1318, %v1316
        %v1341 = vpack.c.b16 %v1321, %v1319
        %v1342 = vpack.c.b16 %v1322, %v1320
        %v1343 = vpack.c.b16 %v1325, %v1323
        %v1344 = vpack.c.b16 %v1326, %v1324
        %v1345 = vpack.c.b16 %v1329, %v1327
        %v1346 = vpack.c.b16 %v1330, %v1328
        %1363 = vmatpush.bf16.msra.mxu0 %v1345
        %1364 = vmatpush.bf16.msra.mxu0 %v1343
        %1365 = vmatpush.bf16.msra.mxu0 %v1341
        %1366 = vmatpush.bf16.msra.mxu0 %v1339
        %1367 = vmatpush.bf16.msra.mxu0 %v1337
        %1368 = vmatpush.bf16.msra.mxu0 %v1335
        %1369 = vmatpush.bf16.msra.mxu0 %v1333
        %1370 = vmatpush.bf16.msra.mxu0 %v1331
        %1371 = vmatmul.bf16.gmra.mxu0 %v1260
        %v1372 = vpop.f32.mrf.mxu0
        %v1373 = vadd.f32 %v1279, %v1372
        %v1374 = vpop.f32.mrf.mxu0
        %1375 = vdwg.mxu0
        %1376 = vmatpush.bf16.msra.mxu0 %v1346
        %1377 = vmatpush.bf16.msra.mxu0 %v1344
        %1378 = vmatpush.bf16.msra.mxu0 %v1342
        %1379 = vmatpush.bf16.msra.mxu0 %v1340
        %1380 = vmatpush.bf16.msra.mxu0 %v1338
        %1381 = vmatpush.bf16.msra.mxu0 %v1336
        %1382 = vmatpush.bf16.msra.mxu0 %v1334
        %1383 = vmatpush.bf16.msra.mxu0 %v1332
        %1384 = vmatmul.bf16.gmra.mxu0 %v1260
        %v1385 = vpop.f32.mrf.mxu0
        %v1386 = vadd.f32 %v1280, %v1385
        %v1387 = vpop.f32.mrf.mxu0
        %1388 = vdwg.mxu0
        %v1389 = vmul.f32 %v1373, %v1373
        %v1390 = vmul.f32 %v1386, %v1386
        %v1391 = vmul.f32 %v1373, %v1389
        %v1392 = vmul.f32 %v1386, %v1390
        %v1393 = vmul.f32 %v1391, 0.044715
        %v1394 = vmul.f32 %v1392, 0.044715
        %v1395 = vadd.f32 %v1373, %v1393
        %v1396 = vadd.f32 %v1386, %v1394
        %v1397 = vmul.f32 %v1395, 0.7978846
        %v1398 = vmul.f32 %v1396, 0.7978846
        %v1399 = vtanh.pop %v1397
        %v1400 = vtanh.pop %v1398
        %v1401 = vadd.f32 %v1399, 1.0
        %v1402 = vadd.f32 %v1400, 1.0
        %v1403 = vmul.f32 %v1401, 0.5
        %v1404 = vmul.f32 %v1402, 0.5
        %v1405 = vmul.f32 %v1373, %v1403
        %v1406 = vmul.f32 %v1386, %v1404
        %v1407 = vpack.c.bf16 %v1405, %v1405
        %v1408 = vpack.c.bf16 %v1406, %v1406
        %v1409 = vld [vmem:[#allocation23] sm:$0xf]
        %v1410 = vld [vmem:[#allocation23 + $0x4] sm:$0xf]
        %v1411 = vld [vmem:[#allocation23 + $0x8] sm:$0xf]
        %v1412 = vld [vmem:[#allocation23 + $0xc] sm:$0xf]
        %v1413 = vld [vmem:[#allocation23 + $0x10] sm:$0xf]
        %v1414 = vld [vmem:[#allocation23 + $0x14] sm:$0xf]
        %v1415 = vld [vmem:[#allocation23 + $0x18] sm:$0xf]
        %v1416 = vld [vmem:[#allocation23 + $0x1c] sm:$0xf]
        %v1417 = vld [vmem:[#allocation23 + $0x20] sm:$0xf]
        %v1418 = vld [vmem:[#allocation23 + $0x24] sm:$0xf]
        %v1419 = vld [vmem:[#allocation23 + $0x28] sm:$0xf]
        %v1420 = vld [vmem:[#allocation23 + $0x2c] sm:$0xf]
        %v1421 = vld [vmem:[#allocation23 + $0x30] sm:$0xf]
        %v1422 = vld [vmem:[#allocation23 + $0x34] sm:$0xf]
        %v1423 = vld [vmem:[#allocation23 + $0x38] sm:$0xf]
        %v1424 = vld [vmem:[#allocation23 + $0x3c] sm:$0xf]
        %v1425 = vld [vmem:[#allocation23 + $0x40] sm:$0xf]
        %v1426 = vld [vmem:[#allocation23 + $0x44] sm:$0xf]
        %v1427 = vld [vmem:[#allocation23 + $0x48] sm:$0xf]
        %v1428 = vld [vmem:[#allocation23 + $0x4c] sm:$0xf]
        %v1429 = vld [vmem:[#allocation23 + $0x50] sm:$0xf]
        %v1430 = vld [vmem:[#allocation23 + $0x54] sm:$0xf]
        %v1431 = vld [vmem:[#allocation23 + $0x58] sm:$0xf]
        %v1432 = vld [vmem:[#allocation23 + $0x5c] sm:$0xf]
        %v1433 = vld [vmem:[#allocation23 + $0x60] sm:$0xf]
        %v1434 = vld [vmem:[#allocation23 + $0x64] sm:$0xf]
        %v1435 = vld [vmem:[#allocation23 + $0x68] sm:$0xf]
        %v1436 = vld [vmem:[#allocation23 + $0x6c] sm:$0xf]
        %v1437 = vld [vmem:[#allocation23 + $0x70] sm:$0xf]
        %v1438 = vld [vmem:[#allocation23 + $0x74] sm:$0xf]
        %v1439 = vld [vmem:[#allocation23 + $0x78] sm:$0xf]
        %v1440 = vld [vmem:[#allocation23 + $0x7c] sm:$0xf]
        %v1441 = vld [vmem:[%s17] sm:$0x1]
        %v1443 = vperm.slane %v1441, 0
        %v1477 = vunpack.c.l.b16 %v1409
        %v1478 = vunpack.c.l.b16 %v1410
        %v1479 = vunpack.c.l.b16 %v1411
        %v1480 = vunpack.c.l.b16 %v1412
        %v1481 = vunpack.c.l.b16 %v1413
        %v1482 = vunpack.c.l.b16 %v1414
        %v1483 = vunpack.c.l.b16 %v1415
        %v1484 = vunpack.c.l.b16 %v1416
        %v1485 = vunpack.c.l.b16 %v1417
        %v1486 = vunpack.c.l.b16 %v1418
        %v1487 = vunpack.c.l.b16 %v1419
        %v1488 = vunpack.c.l.b16 %v1420
        %v1489 = vunpack.c.l.b16 %v1421
        %v1490 = vunpack.c.l.b16 %v1422
        %v1491 = vunpack.c.l.b16 %v1423
        %v1492 = vunpack.c.l.b16 %v1424
        %v1493 = vunpack.c.l.b16 %v1425
        %v1494 = vunpack.c.l.b16 %v1426
        %v1495 = vunpack.c.l.b16 %v1427
        %v1496 = vunpack.c.l.b16 %v1428
        %v1497 = vunpack.c.l.b16 %v1429
        %v1498 = vunpack.c.l.b16 %v1430
        %v1499 = vunpack.c.l.b16 %v1431
        %v1500 = vunpack.c.l.b16 %v1432
        %v1501 = vunpack.c.l.b16 %v1433
        %v1502 = vunpack.c.l.b16 %v1434
        %v1503 = vunpack.c.l.b16 %v1435
        %v1504 = vunpack.c.l.b16 %v1436
        %v1505 = vunpack.c.l.b16 %v1437
        %v1506 = vunpack.c.l.b16 %v1438
        %v1507 = vunpack.c.l.b16 %v1439
        %v1508 = vunpack.c.l.b16 %v1440
        %v1509 = vpack.c.b16 %v1478, %v1477
        %v1510 = vpack.c.b16 %v1480, %v1479
        %v1511 = vpack.c.b16 %v1482, %v1481
        %v1512 = vpack.c.b16 %v1484, %v1483
        %v1513 = vpack.c.b16 %v1486, %v1485
        %v1514 = vpack.c.b16 %v1488, %v1487
        %v1515 = vpack.c.b16 %v1490, %v1489
        %v1516 = vpack.c.b16 %v1492, %v1491
        %v1517 = vpack.c.b16 %v1494, %v1493
        %v1518 = vpack.c.b16 %v1496, %v1495
        %v1519 = vpack.c.b16 %v1498, %v1497
        %v1520 = vpack.c.b16 %v1500, %v1499
        %v1521 = vpack.c.b16 %v1502, %v1501
        %v1522 = vpack.c.b16 %v1504, %v1503
        %v1523 = vpack.c.b16 %v1506, %v1505
        %v1524 = vpack.c.b16 %v1508, %v1507
        %1541 = vmatpush.bf16.msra.mxu0 %v1516
        %1542 = vmatpush.bf16.msra.mxu0 %v1515
        %1543 = vmatpush.bf16.msra.mxu0 %v1514
        %1544 = vmatpush.bf16.msra.mxu0 %v1513
        %1545 = vmatpush.bf16.msra.mxu0 %v1512
        %1546 = vmatpush.bf16.msra.mxu0 %v1511
        %1547 = vmatpush.bf16.msra.mxu0 %v1510
        %1548 = vmatpush.bf16.msra.mxu0 %v1509
        %1549 = vmatmul.bf16.gmra.mxu0 %v1407
        %v1550 = vpop.f32.mrf.mxu0
        %v1551 = vadd.f32 %v1443, %v1550
        %v1552 = vpop.f32.mrf.mxu0
        %1553 = vdwg.mxu0
        %1554 = vmatpush.bf16.msra.mxu0 %v1524
        %1555 = vmatpush.bf16.msra.mxu0 %v1523
        %1556 = vmatpush.bf16.msra.mxu0 %v1522
        %1557 = vmatpush.bf16.msra.mxu0 %v1521
        %1558 = vmatpush.bf16.msra.mxu0 %v1520
        %1559 = vmatpush.bf16.msra.mxu0 %v1519
        %1560 = vmatpush.bf16.msra.mxu0 %v1518
        %1561 = vmatpush.bf16.msra.mxu0 %v1517
        %1562 = vmatmul.bf16.gmra.mxu0 %v1408
        %v1563 = vpop.f32.mrf.mxu0
        %v1564 = vadd.f32 %v1551, %v1563
        %v1565 = vpop.f32.mrf.mxu0
        %1566 = vdwg.mxu0
        %v1567 = vadd.f32 %v1259, %v1564
        %s1568 = scalar_lea.vmem %s13, 2
        %v1569 = vld [vmem:[%s1568] sm:$0x1]
        %s1570 = scalar_lea.vmem %s13, 3
        %v1571 = vld [vmem:[%s1570] sm:$0x1]
        %1572 = vadd.xlane.f32.xlu0 %v1567
        %v1573 = vpop.xlane.xlu0 %1572
        %v1574 = vmul.f32 %v1573, %v1233
        %v1575 = vsub.f32 %v1567, %v1574
        %v1576 = vmul.f32 %v1575, %v1575
        %1577 = vadd.xlane.f32.xlu0 %v1576
        %v1578 = vpop.xlane.xlu0 %1577
        %v1579 = vmul.f32 %v1578, %v1233
        %v1580 = vadd.f32 %v1579, 1e-05
        %v1581 = vrsqrt.pop %v1580
        %v1582 = vmul.f32 %v1581, %v1580
        %v1583 = vmul.f32 %v1582, %v1581
        %v1584 = vmul.f32 0.5, %v1583
        %v1585 = vsub.f32 1.5, %v1584
        %v1586 = vmul.f32 %v1581, %v1585
        %vm1587 = vweird.f32 %v1580
        %vm1588 = vweird.f32 %v1581
        %vm1589 = vmor %vm1587, %vm1588
        %v1590 = vsel %vm1589, %v1581, %v1586
        %v1591 = vmul.f32 %v1575, %v1590
        %v1593 = vperm.slane %v1569, 0
        %v1595 = vmul.f32 %v1591, %v1593
        %v1597 = vperm.slane %v1571, 0
        %v1599 = vadd.f32 %v1595, %v1597
        %1600 = vst [vmem:[%s747] sm:$0xff] %v1599
        %s1601 = sand.u32 %s425, 1
        %s1602 = scalar_lea.sflag [#allocation8], %s1601
        %s1603 = sand.u32 %s425, 1
        %s1604 = smul.addr %s1603, 8
        %s1605 = scalar_lea.vmem [#allocation24], %s1604
        // Predicated region
        $region133: #{tpu_custom_call.1} parent=87 // pred_check
          %p1606 = pneg %p435
        $region134: #{tpu_custom_call.1} parent=87 // pred_check_branch
          %1608 = sbr.rel (%p1606) target = $region136
        $region135: #{tpu_custom_call.1} parent=87 // pred_region
          %1610 = vsyncadd %s1602, 0
          %s1611 = smul.addr %s50, 8
          %s1612 = scalar_lea.hbm %s18, %s1611
          %s1614 = sshll.u32 %s1605, 4
          %s1615 = int_to_ptr.vmem [resolvable:$true] %s1614
          %s1616 = sshll.u32 %s1612, 4
          %s1617 = int_to_ptr.hbm [resolvable:$true] %s1616
          %1619 = dma.vmem_to_hbm [thread:$0]  %s1615, 128, %s1617, %s1602
        $region136: #{tpu_custom_call.1} parent=87 // pred_fallthru
          _
      $region88: #{tpu_custom_call.1} parent=5 // pred_fallthru
        _
      %p1620 = scmp.le.s32.totalorder 2, %s45
      // Predicated region
      $region137: #{tpu_custom_call.1} parent=5 // pred_check
        %p1621 = pneg %p1620
      $region138: #{tpu_custom_call.1} parent=5 // pred_check_branch
        %1623 = sbr.rel (%p1621) target = $region140
      $region139: #{tpu_custom_call.1} parent=5 // pred_region
        %s1624 = ssub.s32 %s45, 2
        // Predicated region
        $region141: #{tpu_custom_call.1} parent=139 // pred_check
          %p1625 = pneg %p441
        $region142: #{tpu_custom_call.1} parent=139 // pred_check_branch
          %1627 = sbr.rel (%p1625) target = $region144
        $region143: #{tpu_custom_call.1} parent=139 // pred_region
          %s1628 = sand.u32 %s426, 1
          %s1629 = scalar_lea.sflag [#allocation8], %s1628
          %s1630 = sand.u32 %s426, 1
          %s1631 = smul.addr %s1630, 8
          %s1632 = scalar_lea.vmem [#allocation24], %s1631
          %1634 = dma.done %s1629, 128
        $region144: #{tpu_custom_call.1} parent=139 // pred_fallthru
          _
      $region140: #{tpu_custom_call.1} parent=5 // pred_fallthru
        _
    $region6: #{tpu_custom_call.1} parent=1 // loop_footer
      %s49 = sadd.s32 1, %s45
    $region7: #{tpu_custom_call.1} parent=1 // loop_footer_branch
      %44 = sbr.rel target = $region3
    $region8: #{tpu_custom_call.1} parent=1 // loop_exit
      _
    %1635 = vsyncpa [#allocation7], 1
    %s1636 = scalar_lea.sflag [#allocation7], 1
    %1637 = vsyncpa %s1636, 1
    %1638 = vsyncpa [#allocation10], 1
    %s1639 = scalar_lea.sflag [#allocation10], 1
    %1640 = vsyncpa %s1639, 1
    %1641 = vsyncpa [#allocation13], 1
    %1642 = vsyncpa [#allocation16], 1
    %1643 = vsyncpa [#allocation19], 1
    %1644 = vsyncpa [#allocation22], 1
    %1645 = vsyncpa [#allocation8], 1
    %s1646 = scalar_lea.sflag [#allocation8], 1
    %1647 = vsyncpa %s1646, 1

</llo_original>
